<compile_context>
chip_gen: v7x
topology: tpu7x:2x2x1
jax: 0.10.0
libtpu: 0.0.40
codegen_flags: <defaults>
</compile_context>

<pallas_src>
import jax
import jax.numpy as jnp
from jax.experimental import pallas as pl
from jax.experimental.pallas import tpu as pltpu

BN_EPS = 1e-5


def _cparams():
    # v7x has only 64 MiB VMEM -> keep the scoped limit conservative; the per-step
    # working set of these kernels is ~1-3 MiB so this is plenty on all generations.
    return pltpu.CompilerParams(
        dimension_semantics=("parallel",),
        vmem_limit_bytes=48 * 1024 * 1024,
    )


# --------------------------- conv 3x3 (pass 1) ----------------------------- #
def _make_conv3x3_kernel(num_inputs):
    """Kernel factory: num_inputs padded NHWC inputs + num_inputs weight mats."""

    def kernel(*refs):
        in_refs = refs[:num_inputs]                 # each (1, H+2, W+2, Ci) bf16
        w_refs = refs[num_inputs:2 * num_inputs]    # each (9*Ci, Cout) bf16
        o_ref = refs[2 * num_inputs]                # (H*W, Cout) f32 raw conv out
        st_ref = refs[2 * num_inputs + 1]           # (1, 2, Cout) f32 sum / sumsq

        Hp, Wp = in_refs[0].shape[1], in_refs[0].shape[2]
        H, W = Hp - 2, Wp - 2
        Cout = o_ref.shape[-1]

        acc = None
        for x_ref, w_ref in zip(in_refs, w_refs):
            x = x_ref[0]                            # (H+2, W+2, Ci) bf16
            Ci = x.shape[-1]
            # im2col: 9 shifted views concatenated along lanes -> ONE matmul
            cols = [x[dy:dy + H, dx:dx + W, :].reshape(H * W, Ci)
                    for dy in range(3) for dx in range(3)]
            patch = jnp.concatenate(cols, axis=-1)  # (H*W, 9*Ci) bf16
            d = jnp.dot(patch, w_ref[...], preferred_element_type=jnp.float32)
            acc = d if acc is None else acc + d     # (H*W, Cout) f32

        o_ref[...] = acc
        # one-pass BN statistics for this image (folded over the batch in the wrapper)
        s = jnp.sum(acc, axis=0, keepdims=True)          # (1, Cout)
        sq = jnp.sum(acc * acc, axis=0, keepdims=True)   # (1, Cout)
        st_ref[...] = jnp.concatenate([s, sq], axis=0)[None]   # (1, 2, Cout)

    return kernel


# ----------------------- BN + ReLU (pass 2) kernels ------------------------ #
def _bn_relu_kernel(raw_ref, sc_ref, sh_ref, o_ref):
    # lane-dense slab form: raw (H, W*C), sc/sh (1, W*C)
    o_ref[...] = jnp.maximum(raw_ref[...] * sc_ref[...] + sh_ref[...], 0.0)


def _bn_relu_pool_kernel(raw_ref, sc_ref, sh_ref, o_ref, pool_ref):
    # channel-minor form: raw (H*W, C), sc/sh (1, C); also emits CA pooling stats.
    y = jnp.maximum(raw_ref[...] * sc_ref[...] + sh_ref[...], 0.0)
    o_ref[...] = y
    s = jnp.sum(y, axis=0, keepdims=True)     # spatial sum  (AdaptiveAvgPool numerator)
    mx = jnp.max(y, axis=0, keepdims=True)    # spatial max  (AdaptiveMaxPool)
    pool_ref[...] = jnp.concatenate([s, mx], axis=0)[None]    # (1, 2, C)


# -------------------- channel gate + spatial attention --------------------- #
def _attention_kernel(y_ref, ca_ref, wsa_ref, o_ref):
    # y_ref : (1, H, W, C) f32   c4 output (post BN+ReLU)
    # ca_ref: (1, 1, C)    f32   sigmoid channel gate for this image
    # wsa_ref: (2, 49)     f32   SMEM SpatialAttention 7x7 conv weights [avg, max]
    # o_ref : (1, H, W, C) f32
    H, W = y_ref.shape[1], y_ref.shape[2]

    x = y_ref[0] * ca_ref[...]                         # (H, W, C) * (1, 1, C)
    avg_c = jnp.mean(x, axis=-1, keepdims=True)        # (H, W, 1)
    max_c = jnp.max(x, axis=-1, keepdims=True)         # (H, W, 1)

    def pad3(a):   # zero pad by 3 on both spatial axes via concatenate
        zr = jnp.zeros((3, W, 1), a.dtype)
        a = jnp.concatenate([zr, a, zr], axis=0)       # (H+6, W, 1)
        zc = jnp.zeros((H + 6, 3, 1), a.dtype)
        return jnp.concatenate([zc, a, zc], axis=1)    # (H+6, W+6, 1)

    ap, mp = pad3(avg_c), pad3(max_c)
    acc = jnp.zeros((H, W, 1), jnp.float32)
    for k in range(49):                                # 7x7 conv, 2 in -> 1 out
        dy, dx = divmod(k, 7)
        acc = acc + wsa_ref[0, k] * ap[dy:dy + H, dx:dx + W, :] \
                  + wsa_ref[1, k] * mp[dy:dy + H, dx:dx + W, :]
    sa = jax.nn.sigmoid(acc)                           # (H, W, 1)
    o_ref[...] = (x * sa)[None]


# ------------------------------ JAX wrappers -------------------------------- #
def conv3x3_bn_relu(inputs, w_hwio, gamma, beta, *, pool=False):
    """Conv2D block: 3x3 conv (pad 1, no bias) on the channel-concat of `inputs`,
    training-mode BatchNorm, ReLU.  The concat is implicit via weight splitting."""
    N, H, W, _ = inputs[0].shape
    cins = [int(a.shape[-1]) for a in inputs]
    Cin, Cout = sum(cins), int(w_hwio.shape[-1])
    assert w_hwio.shape == (3, 3, Cin, Cout)

    padded, weights, in_specs = [], [], []
    off = 0
    for a, ci in zip(inputs, cins):
        padded.append(jnp.pad(a, ((0, 0), (1, 1), (1, 1), (0, 0))).astype(jnp.bfloat16))
        in_specs.append(pl.BlockSpec((1, H + 2, W + 2, ci), lambda n: (n, 0, 0, 0)))
        weights.append(
            w_hwio[:, :, off:off + ci, :].reshape(9 * ci, Cout).astype(jnp.bfloat16))
        off += ci
    for ci in cins:
        in_specs.append(pl.BlockSpec((9 * ci, Cout), lambda n: (0, 0)))

    raw, part = pl.pallas_call(
        _make_conv3x3_kernel(len(inputs)),
        grid=(N,),
        in_specs=in_specs,
        out_specs=[pl.BlockSpec((H * W, Cout), lambda n: (n, 0)),
                   pl.BlockSpec((1, 2, Cout), lambda n: (n, 0, 0))],
        out_shape=[jax.ShapeDtypeStruct((N * H * W, Cout), jnp.float32),
                   jax.ShapeDtypeStruct((N, 2, Cout), jnp.float32)],
        compiler_params=_cparams(),
    )(*padded, *weights)

    # fold batch statistics (global over N*H*W) into a per-channel scale/shift
    cnt = float(N * H * W)
    tot = jnp.sum(part, axis=0)                         # (2, Cout)
    mean = tot[0] / cnt
    var = jnp.maximum(tot[1] / cnt - mean * mean, 0.0)  # biased var (train-mode BN)
    scale = gamma * jax.lax.rsqrt(var + BN_EPS)
    shift = beta - mean * scale

    if pool:
        y, pooled = pl.pallas_call(
            _bn_relu_pool_kernel,
            grid=(N,),
            in_specs=[pl.BlockSpec((H * W, Cout), lambda n: (n, 0)),
                      pl.BlockSpec((1, Cout), lambda n: (0, 0)),
                      pl.BlockSpec((1, Cout), lambda n: (0, 0))],
            out_specs=[pl.BlockSpec((H * W, Cout), lambda n: (n, 0)),
                       pl.BlockSpec((1, 2, Cout), lambda n: (n, 0, 0))],
            out_shape=[jax.ShapeDtypeStruct((N * H * W, Cout), jnp.float32),
                       jax.ShapeDtypeStruct((N, 2, Cout), jnp.float32)],
            compiler_params=_cparams(),
        )(raw, scale.reshape(1, Cout), shift.reshape(1, Cout))
        return y.reshape(N, H, W, Cout), pooled

    # lane-dense slab: (N*H*W, C) -> (N*H, W*C) is a free (contiguous) reshape in XLA
    raw_slab = raw.reshape(N * H, W * Cout)
    scale_t = jnp.tile(scale, W).reshape(1, W * Cout)
    shift_t = jnp.tile(shift, W).reshape(1, W * Cout)
    y_slab = pl.pallas_call(
        _bn_relu_kernel,
        grid=(N,),
        in_specs=[pl.BlockSpec((H, W * Cout), lambda n: (n, 0)),
                  pl.BlockSpec((1, W * Cout), lambda n: (0, 0)),
                  pl.BlockSpec((1, W * Cout), lambda n: (0, 0))],
        out_specs=pl.BlockSpec((H, W * Cout), lambda n: (n, 0)),
        out_shape=jax.ShapeDtypeStruct((N * H, W * Cout), jnp.float32),
        compiler_params=_cparams(),
    )(raw_slab, scale_t, shift_t)
    return y_slab.reshape(N, H, W, Cout)


def channel_spatial_attention(y_nhwc, pooled, ca_w1, ca_w2, sa_w):
    """x * ChannelAttention(x), then * SpatialAttention(result)."""
    N, H, W, C = y_nhwc.shape
    avg = pooled[:, 0, :] / float(H * W)       # (N, C)  adaptive avg pool
    mx = pooled[:, 1, :]                       # (N, C)  adaptive max pool

    def mlp(v):                                # tiny C -> C//16 -> C MLP (plain JAX)
        return jnp.maximum(v @ ca_w1, 0.0) @ ca_w2

    ca = jax.nn.sigmoid(mlp(avg) + mlp(mx)).reshape(N, 1, C).astype(jnp.float32)

    out = pl.pallas_call(
        _attention_kernel,
        grid=(N,),
        in_specs=[pl.BlockSpec((1, H, W, C), lambda n: (n, 0, 0, 0)),
                  pl.BlockSpec((1, 1, C), lambda n: (n, 0, 0)),
                  pl.BlockSpec(memory_space=pltpu.MemorySpace.SMEM)],
        out_specs=pl.BlockSpec((1, H, W, C), lambda n: (n, 0, 0, 0)),
        out_shape=jax.ShapeDtypeStruct((N, H, W, C), jnp.float32),
        compiler_params=_cparams(),
    )(y_nhwc, ca, sa_w)
    return out


def upsample_bilinear_x2(x):
    """nn.Upsample(scale_factor=2, mode='bilinear', align_corners=True), NHWC."""
    N, H, W, C = x.shape
    Ho, Wo = 2 * H, 2 * W

    def grid(out_size, in_size):
        if in_size == 1 or out_size == 1:
            pos = jnp.zeros((out_size,), jnp.float32)
        else:
            pos = jnp.arange(out_size, dtype=jnp.float32) * (
                (in_size - 1) / (out_size - 1))
        lo = jnp.floor(pos).astype(jnp.int32)
        hi = jnp.minimum(lo + 1, in_size - 1)
        frac = (pos - lo.astype(jnp.float32)).astype(x.dtype)
        return lo, hi, frac

    ylo, yhi, yf = grid(Ho, H)
    xlo, xhi, xf = grid(Wo, W)
    yf = yf[None, :, None, None]
    xf = xf[None, None, :, None]
    x_y_lo, x_y_hi = x[:, ylo, :, :], x[:, yhi, :, :]
    top = x_y_lo[:, :, xlo, :] * (1.0 - xf) + x_y_lo[:, :, xhi, :] * xf
    bot = x_y_hi[:, :, xlo, :] * (1.0 - xf) + x_y_hi[:, :, xhi, :] * xf
    return top * (1.0 - yf) + bot * yf


def multiscale_feature_fusion(f1, f2, f3, params):
    """MultiScale_Feature_Fusion.forward(f1, f2, f3); NCHW in / NCHW out."""
    x = jnp.transpose(f1, (0, 2, 3, 1))
    s2 = jnp.transpose(f2, (0, 2, 3, 1))
    s3 = jnp.transpose(f3, (0, 2, 3, 1))

    x = upsample_bilinear_x2(x)                                          # up_2(f1)
    x = conv3x3_bn_relu([x], params["c1"]["w"], params["c1"]["g"], params["c1"]["b"])
    # torch: cat([x, f2]); up_2; c2  ==  c2([up_2(x), up_2(f2)]) with Cin-split weights
    x = upsample_bilinear_x2(x)
    s2u = upsample_bilinear_x2(s2)
    x = conv3x3_bn_relu([x, s2u], params["c2"]["w"], params["c2"]["g"], params["c2"]["b"])
    # torch: cat([x, f3]); up_2; c4
    x = upsample_bilinear_x2(x)
    s3u = upsample_bilinear_x2(s3)
    y, pooled = conv3x3_bn_relu([x, s3u], params["c4"]["w"],
                                params["c4"]["g"], params["c4"]["b"], pool=True)
    out = channel_spatial_attention(y, pooled,
                                    params["ca_w1"], params["ca_w2"], params["sa_w"])
    return jnp.transpose(out, (0, 3, 1, 2))


# --------------------------- deterministic params --------------------------- #
def init_params(key, in_c, out_c):
    assert out_c >= 16, "ChannelAttention uses out_c // 16 hidden channels"
    ks = jax.random.split(key, 6)

    def conv_w(k, cin, cout):
        return jax.random.normal(k, (3, 3, cin, cout), jnp.float32) / jnp.sqrt(9.0 * cin)

    def bn(cout):
        return jnp.ones((cout,), jnp.float32), jnp.zeros((cout,), jnp.float32)

    hidden = out_c // 16
    g1, b1 = bn(out_c)
    g2, b2 = bn(out_c)
    g4, b4 = bn(out_c)
    # note: the PyTorch module also defines c3, which is unused in forward().
    return dict(
        c1=dict(w=conv_w(ks[0], in_c, out_c), g=g1, b=b1),
        c2=dict(w=conv_w(ks[1], out_c + in_c, out_c), g=g2, b=b2),
        c4=dict(w=conv_w(ks[2], out_c + in_c, out_c), g=g4, b=b4),
        ca_w1=jax.random.normal(ks[3], (out_c, hidden), jnp.float32) / jnp.sqrt(1.0 * out_c),
        ca_w2=jax.random.normal(ks[4], (hidden, out_c), jnp.float32) / jnp.sqrt(1.0 * hidden),
        sa_w=jax.random.normal(ks[5], (2, 49), jnp.float32) / jnp.sqrt(98.0),
    )


if __name__ == "__main__":
    key = jax.random.PRNGKey(0)
    k1, k2, k3, kp = jax.random.split(key, 4)

    N, in_c, out_c = 2, 16, 32
    H0 = W0 = 4
    f1 = jax.random.normal(k1, (N, in_c, H0, W0), jnp.float32)
    f2 = jax.random.normal(k2, (N, in_c, 2 * H0, 2 * W0), jnp.float32)
    f3 = jax.random.normal(k3, (N, in_c, 4 * H0, 4 * W0), jnp.float32)
    params = init_params(kp, in_c, out_c)

    fused = jax.jit(multiscale_feature_fusion)
    y = jax.block_until_ready(fused(f1, f2, f3, params))

    assert y.shape == (N, out_c, 8 * H0, 8 * W0), y.shape
    assert bool(jnp.all(jnp.isfinite(y)))
    print("KERNEL_OK")
</pallas_src>

<mosaic_0001>
module attributes {stable_mosaic.version = 11 : i64} {
  func.func @kernel(%arg0: i32, %arg1: memref<1x10x10x16xbf16, #tpu.memory_space<vmem>>, %arg2: memref<144x32xbf16, #tpu.memory_space<vmem>>, %arg3: memref<64x32xf32, #tpu.memory_space<vmem>>, %arg4: memref<1x2x32xf32, #tpu.memory_space<vmem>>) attributes {dimension_semantics = [#tpu.dimension_semantics<parallel>], iteration_bounds = array<i64: 2>, scalar_prefetch = 0 : i64, scratch_operands = 0 : i64, tpu.core_type = #tpu.core_type<tc>, window_params = [{transform_indices = @transform_0, window_bounds = array<i64: 1, 10, 10, 16>}, {pipeline_mode = #tpu.pipeline_mode<synchronous>, transform_indices = @transform_1, window_bounds = array<i64: 144, 32>}, {transform_indices = @transform_2, window_bounds = array<i64: 64, 32>}, {transform_indices = @transform_3, window_bounds = array<i64: 1, 2, 32>}]} {
    %c0 = arith.constant 0 : index
    %c0_0 = arith.constant 0 : index
    %c0_1 = arith.constant 0 : index
    %c0_2 = arith.constant 0 : index
    %0 = vector.load %arg1[%c0, %c0_0, %c0_1, %c0_2] : memref<1x10x10x16xbf16, #tpu.memory_space<vmem>>, vector<1x10x10x16xbf16>
    %1 = vector.shape_cast %0 : vector<1x10x10x16xbf16> to vector<10x10x16xbf16>
    %2 = vector.extract_strided_slice %1 {offsets = [0, 0, 0], sizes = [8, 8, 16], strides = [1, 1, 1]} : vector<10x10x16xbf16> to vector<8x8x16xbf16>
    %3 = vector.shape_cast %2 : vector<8x8x16xbf16> to vector<64x16xbf16>
    %4 = vector.extract_strided_slice %1 {offsets = [0, 1, 0], sizes = [8, 8, 16], strides = [1, 1, 1]} : vector<10x10x16xbf16> to vector<8x8x16xbf16>
    %5 = vector.shape_cast %4 : vector<8x8x16xbf16> to vector<64x16xbf16>
    %6 = vector.extract_strided_slice %1 {offsets = [0, 2, 0], sizes = [8, 8, 16], strides = [1, 1, 1]} : vector<10x10x16xbf16> to vector<8x8x16xbf16>
    %7 = vector.shape_cast %6 : vector<8x8x16xbf16> to vector<64x16xbf16>
    %8 = vector.extract_strided_slice %1 {offsets = [1, 0, 0], sizes = [8, 8, 16], strides = [1, 1, 1]} : vector<10x10x16xbf16> to vector<8x8x16xbf16>
    %9 = vector.shape_cast %8 : vector<8x8x16xbf16> to vector<64x16xbf16>
    %10 = vector.extract_strided_slice %1 {offsets = [1, 1, 0], sizes = [8, 8, 16], strides = [1, 1, 1]} : vector<10x10x16xbf16> to vector<8x8x16xbf16>
    %11 = vector.shape_cast %10 : vector<8x8x16xbf16> to vector<64x16xbf16>
    %12 = vector.extract_strided_slice %1 {offsets = [1, 2, 0], sizes = [8, 8, 16], strides = [1, 1, 1]} : vector<10x10x16xbf16> to vector<8x8x16xbf16>
    %13 = vector.shape_cast %12 : vector<8x8x16xbf16> to vector<64x16xbf16>
    %14 = vector.extract_strided_slice %1 {offsets = [2, 0, 0], sizes = [8, 8, 16], strides = [1, 1, 1]} : vector<10x10x16xbf16> to vector<8x8x16xbf16>
    %15 = vector.shape_cast %14 : vector<8x8x16xbf16> to vector<64x16xbf16>
    %16 = vector.extract_strided_slice %1 {offsets = [2, 1, 0], sizes = [8, 8, 16], strides = [1, 1, 1]} : vector<10x10x16xbf16> to vector<8x8x16xbf16>
    %17 = vector.shape_cast %16 : vector<8x8x16xbf16> to vector<64x16xbf16>
    %18 = vector.extract_strided_slice %1 {offsets = [2, 2, 0], sizes = [8, 8, 16], strides = [1, 1, 1]} : vector<10x10x16xbf16> to vector<8x8x16xbf16>
    %19 = vector.shape_cast %18 : vector<8x8x16xbf16> to vector<64x16xbf16>
    %20 = tpu.concatenate %3, %5, %7, %9, %11, %13, %15, %17, %19 in 1 : vector<64x16xbf16>, vector<64x16xbf16>, vector<64x16xbf16>, vector<64x16xbf16>, vector<64x16xbf16>, vector<64x16xbf16>, vector<64x16xbf16>, vector<64x16xbf16>, vector<64x16xbf16> -> vector<64x144xbf16>
    %c0_3 = arith.constant 0 : index
    %c0_4 = arith.constant 0 : index
    %21 = vector.load %arg2[%c0_3, %c0_4] : memref<144x32xbf16, #tpu.memory_space<vmem>>, vector<144x32xbf16>
    %cst = arith.constant dense<0.000000e+00> : vector<64x32xf32>
    %22 = tpu.matmul %20, %21, %cst {dimension_numbers = #tpu.dot_dimension_numbers<[1], [0], [0], [1], [0, 0, 1, 1], [], []>} : vector<64x144xbf16>, vector<144x32xbf16>, vector<64x32xf32> -> vector<64x32xf32>
    %c0_5 = arith.constant 0 : index
    %c0_6 = arith.constant 0 : index
    %23 = vector.load %arg3[%c0_5, %c0_6] : memref<64x32xf32, #tpu.memory_space<vmem>>, vector<64x32xf32>
    tpu.vector_store %arg3[%c0_5, %c0_6], %22 {strides = array<i32>} : memref<64x32xf32, #tpu.memory_space<vmem>>, vector<64x32xf32>,
    %cst_7 = arith.constant dense<0.000000e+00> : vector<32xf32>
    %24 = vector.multi_reduction <add>, %22, %cst_7 [0] : vector<64x32xf32> to vector<32xf32>
    %25 = vector.shape_cast %24 : vector<32xf32> to vector<1x32xf32>
    %26 = arith.mulf %22, %22 : vector<64x32xf32>
    %cst_8 = arith.constant dense<0.000000e+00> : vector<32xf32>
    %27 = vector.multi_reduction <add>, %26, %cst_8 [0] : vector<64x32xf32> to vector<32xf32>
    %28 = vector.shape_cast %27 : vector<32xf32> to vector<1x32xf32>
    %29 = tpu.concatenate %25, %28 in 0 : vector<1x32xf32>, vector<1x32xf32> -> vector<2x32xf32>
    %30 = vector.shape_cast %29 : vector<2x32xf32> to vector<1x2x32xf32>
    %c0_9 = arith.constant 0 : index
    %c0_10 = arith.constant 0 : index
    %c0_11 = arith.constant 0 : index
    %31 = vector.load %arg4[%c0_9, %c0_10, %c0_11] : memref<1x2x32xf32, #tpu.memory_space<vmem>>, vector<1x2x32xf32>
    tpu.vector_store %arg4[%c0_9, %c0_10, %c0_11], %30 {strides = array<i32>} : memref<1x2x32xf32, #tpu.memory_space<vmem>>, vector<1x2x32xf32>,
    return
  }
  func.func @transform_0(%arg0: i32) -> (i32, i32, i32, i32) {
    %c0_i32 = arith.constant 0 : i32
    %c0_i32_0 = arith.constant 0 : i32
    %c0_i32_1 = arith.constant 0 : i32
    %c0_i32_2 = arith.constant 0 : i32
    return %arg0, %c0_i32, %c0_i32_0, %c0_i32_1 : i32, i32, i32, i32
  }
  func.func @transform_1(%arg0: i32) -> (i32, i32) {
    %c0_i32 = arith.constant 0 : i32
    %c0_i32_0 = arith.constant 0 : i32
    %c0_i32_1 = arith.constant 0 : i32
    return %c0_i32, %c0_i32_0 : i32, i32
  }
  func.func @transform_2(%arg0: i32) -> (i32, i32) {
    %c0_i32 = arith.constant 0 : i32
    %c0_i32_0 = arith.constant 0 : i32
    return %arg0, %c0_i32 : i32, i32
  }
  func.func @transform_3(%arg0: i32) -> (i32, i32, i32) {
    %c0_i32 = arith.constant 0 : i32
    %c0_i32_0 = arith.constant 0 : i32
    %c0_i32_1 = arith.constant 0 : i32
    return %arg0, %c0_i32, %c0_i32_0 : i32, i32, i32
  }
}

module attributes {stable_mosaic.version = 11 : i64} {
  func.func @_bn_relu_kernel(%arg0: i32, %arg1: memref<8x256xf32, #tpu.memory_space<vmem>>, %arg2: memref<1x256xf32, #tpu.memory_space<vmem>>, %arg3: memref<1x256xf32, #tpu.memory_space<vmem>>, %arg4: memref<8x256xf32, #tpu.memory_space<vmem>>) attributes {dimension_semantics = [#tpu.dimension_semantics<parallel>], iteration_bounds = array<i64: 2>, scalar_prefetch = 0 : i64, scratch_operands = 0 : i64, tpu.core_type = #tpu.core_type<tc>, window_params = [{transform_indices = @transform_0, window_bounds = array<i64: 8, 256>}, {pipeline_mode = #tpu.pipeline_mode<synchronous>, transform_indices = @transform_1, window_bounds = array<i64: 1, 256>}, {pipeline_mode = #tpu.pipeline_mode<synchronous>, transform_indices = @transform_2, window_bounds = array<i64: 1, 256>}, {transform_indices = @transform_3, window_bounds = array<i64: 8, 256>}]} {
    %c0 = arith.constant 0 : index
    %c0_0 = arith.constant 0 : index
    %0 = vector.load %arg1[%c0, %c0_0] : memref<8x256xf32, #tpu.memory_space<vmem>>, vector<8x256xf32>
    %c0_1 = arith.constant 0 : index
    %c0_2 = arith.constant 0 : index
    %1 = vector.load %arg2[%c0_1, %c0_2] : memref<1x256xf32, #tpu.memory_space<vmem>>, vector<1x256xf32>
    %2 = vector.broadcast %1 : vector<1x256xf32> to vector<8x256xf32>
    %3 = arith.mulf %0, %2 : vector<8x256xf32>
    %c0_3 = arith.constant 0 : index
    %c0_4 = arith.constant 0 : index
    %4 = vector.load %arg3[%c0_3, %c0_4] : memref<1x256xf32, #tpu.memory_space<vmem>>, vector<1x256xf32>
    %5 = vector.broadcast %4 : vector<1x256xf32> to vector<8x256xf32>
    %6 = arith.addf %3, %5 : vector<8x256xf32>
    %cst = arith.constant 0.000000e+00 : f32
    %7 = vector.broadcast %cst : f32 to vector<8x256xf32>
    %8 = arith.maximumf %6, %7 : vector<8x256xf32>
    %c0_5 = arith.constant 0 : index
    %c0_6 = arith.constant 0 : index
    %9 = vector.load %arg4[%c0_5, %c0_6] : memref<8x256xf32, #tpu.memory_space<vmem>>, vector<8x256xf32>
    tpu.vector_store %arg4[%c0_5, %c0_6], %8 {strides = array<i32>} : memref<8x256xf32, #tpu.memory_space<vmem>>, vector<8x256xf32>,
    return
  }
  func.func @transform_0(%arg0: i32) -> (i32, i32) {
    %c0_i32 = arith.constant 0 : i32
    %c0_i32_0 = arith.constant 0 : i32
    return %arg0, %c0_i32 : i32, i32
  }
  func.func @transform_1(%arg0: i32) -> (i32, i32) {
    %c0_i32 = arith.constant 0 : i32
    %c0_i32_0 = arith.constant 0 : i32
    %c0_i32_1 = arith.constant 0 : i32
    return %c0_i32, %c0_i32_0 : i32, i32
  }
  func.func @transform_2(%arg0: i32) -> (i32, i32) {
    %c0_i32 = arith.constant 0 : i32
    %c0_i32_0 = arith.constant 0 : i32
    %c0_i32_1 = arith.constant 0 : i32
    return %c0_i32, %c0_i32_0 : i32, i32
  }
  func.func @transform_3(%arg0: i32) -> (i32, i32) {
    %c0_i32 = arith.constant 0 : i32
    %c0_i32_0 = arith.constant 0 : i32
    return %arg0, %c0_i32 : i32, i32
  }
}

module attributes {stable_mosaic.version = 11 : i64} {
  func.func @kernel(%arg0: i32, %arg1: memref<1x18x18x32xbf16, #tpu.memory_space<vmem>>, %arg2: memref<1x18x18x16xbf16, #tpu.memory_space<vmem>>, %arg3: memref<288x32xbf16, #tpu.memory_space<vmem>>, %arg4: memref<144x32xbf16, #tpu.memory_space<vmem>>, %arg5: memref<256x32xf32, #tpu.memory_space<vmem>>, %arg6: memref<1x2x32xf32, #tpu.memory_space<vmem>>) attributes {dimension_semantics = [#tpu.dimension_semantics<parallel>], iteration_bounds = array<i64: 2>, scalar_prefetch = 0 : i64, scratch_operands = 0 : i64, tpu.core_type = #tpu.core_type<tc>, window_params = [{transform_indices = @transform_0, window_bounds = array<i64: 1, 18, 18, 32>}, {transform_indices = @transform_1, window_bounds = array<i64: 1, 18, 18, 16>}, {pipeline_mode = #tpu.pipeline_mode<synchronous>, transform_indices = @transform_2, window_bounds = array<i64: 288, 32>}, {pipeline_mode = #tpu.pipeline_mode<synchronous>, transform_indices = @transform_3, window_bounds = array<i64: 144, 32>}, {transform_indices = @transform_4, window_bounds = array<i64: 256, 32>}, {transform_indices = @transform_5, window_bounds = array<i64: 1, 2, 32>}]} {
    %c0 = arith.constant 0 : index
    %c0_0 = arith.constant 0 : index
    %c0_1 = arith.constant 0 : index
    %c0_2 = arith.constant 0 : index
    %0 = vector.load %arg1[%c0, %c0_0, %c0_1, %c0_2] : memref<1x18x18x32xbf16, #tpu.memory_space<vmem>>, vector<1x18x18x32xbf16>
    %1 = vector.shape_cast %0 : vector<1x18x18x32xbf16> to vector<18x18x32xbf16>
    %2 = vector.extract_strided_slice %1 {offsets = [0, 0, 0], sizes = [16, 16, 32], strides = [1, 1, 1]} : vector<18x18x32xbf16> to vector<16x16x32xbf16>
    %3 = vector.shape_cast %2 : vector<16x16x32xbf16> to vector<256x32xbf16>
    %4 = vector.extract_strided_slice %1 {offsets = [0, 1, 0], sizes = [16, 16, 32], strides = [1, 1, 1]} : vector<18x18x32xbf16> to vector<16x16x32xbf16>
    %5 = vector.shape_cast %4 : vector<16x16x32xbf16> to vector<256x32xbf16>
    %6 = vector.extract_strided_slice %1 {offsets = [0, 2, 0], sizes = [16, 16, 32], strides = [1, 1, 1]} : vector<18x18x32xbf16> to vector<16x16x32xbf16>
    %7 = vector.shape_cast %6 : vector<16x16x32xbf16> to vector<256x32xbf16>
    %8 = vector.extract_strided_slice %1 {offsets = [1, 0, 0], sizes = [16, 16, 32], strides = [1, 1, 1]} : vector<18x18x32xbf16> to vector<16x16x32xbf16>
    %9 = vector.shape_cast %8 : vector<16x16x32xbf16> to vector<256x32xbf16>
    %10 = vector.extract_strided_slice %1 {offsets = [1, 1, 0], sizes = [16, 16, 32], strides = [1, 1, 1]} : vector<18x18x32xbf16> to vector<16x16x32xbf16>
    %11 = vector.shape_cast %10 : vector<16x16x32xbf16> to vector<256x32xbf16>
    %12 = vector.extract_strided_slice %1 {offsets = [1, 2, 0], sizes = [16, 16, 32], strides = [1, 1, 1]} : vector<18x18x32xbf16> to vector<16x16x32xbf16>
    %13 = vector.shape_cast %12 : vector<16x16x32xbf16> to vector<256x32xbf16>
    %14 = vector.extract_strided_slice %1 {offsets = [2, 0, 0], sizes = [16, 16, 32], strides = [1, 1, 1]} : vector<18x18x32xbf16> to vector<16x16x32xbf16>
    %15 = vector.shape_cast %14 : vector<16x16x32xbf16> to vector<256x32xbf16>
    %16 = vector.extract_strided_slice %1 {offsets = [2, 1, 0], sizes = [16, 16, 32], strides = [1, 1, 1]} : vector<18x18x32xbf16> to vector<16x16x32xbf16>
    %17 = vector.shape_cast %16 : vector<16x16x32xbf16> to vector<256x32xbf16>
    %18 = vector.extract_strided_slice %1 {offsets = [2, 2, 0], sizes = [16, 16, 32], strides = [1, 1, 1]} : vector<18x18x32xbf16> to vector<16x16x32xbf16>
    %19 = vector.shape_cast %18 : vector<16x16x32xbf16> to vector<256x32xbf16>
    %20 = tpu.concatenate %3, %5, %7, %9, %11, %13, %15, %17, %19 in 1 : vector<256x32xbf16>, vector<256x32xbf16>, vector<256x32xbf16>, vector<256x32xbf16>, vector<256x32xbf16>, vector<256x32xbf16>, vector<256x32xbf16>, vector<256x32xbf16>, vector<256x32xbf16> -> vector<256x288xbf16>
    %c0_3 = arith.constant 0 : index
    %c0_4 = arith.constant 0 : index
    %21 = vector.load %arg3[%c0_3, %c0_4] : memref<288x32xbf16, #tpu.memory_space<vmem>>, vector<288x32xbf16>
    %cst = arith.constant dense<0.000000e+00> : vector<256x32xf32>
    %22 = tpu.matmul %20, %21, %cst {dimension_numbers = #tpu.dot_dimension_numbers<[1], [0], [0], [1], [0, 0, 1, 1], [], []>} : vector<256x288xbf16>, vector<288x32xbf16>, vector<256x32xf32> -> vector<256x32xf32>
    %c0_5 = arith.constant 0 : index
    %c0_6 = arith.constant 0 : index
    %c0_7 = arith.constant 0 : index
    %c0_8 = arith.constant 0 : index
    %23 = vector.load %arg2[%c0_5, %c0_6, %c0_7, %c0_8] : memref<1x18x18x16xbf16, #tpu.memory_space<vmem>>, vector<1x18x18x16xbf16>
    %24 = vector.shape_cast %23 : vector<1x18x18x16xbf16> to vector<18x18x16xbf16>
    %25 = vector.extract_strided_slice %24 {offsets = [0, 0, 0], sizes = [16, 16, 16], strides = [1, 1, 1]} : vector<18x18x16xbf16> to vector<16x16x16xbf16>
    %26 = vector.shape_cast %25 : vector<16x16x16xbf16> to vector<256x16xbf16>
    %27 = vector.extract_strided_slice %24 {offsets = [0, 1, 0], sizes = [16, 16, 16], strides = [1, 1, 1]} : vector<18x18x16xbf16> to vector<16x16x16xbf16>
    %28 = vector.shape_cast %27 : vector<16x16x16xbf16> to vector<256x16xbf16>
    %29 = vector.extract_strided_slice %24 {offsets = [0, 2, 0], sizes = [16, 16, 16], strides = [1, 1, 1]} : vector<18x18x16xbf16> to vector<16x16x16xbf16>
    %30 = vector.shape_cast %29 : vector<16x16x16xbf16> to vector<256x16xbf16>
    %31 = vector.extract_strided_slice %24 {offsets = [1, 0, 0], sizes = [16, 16, 16], strides = [1, 1, 1]} : vector<18x18x16xbf16> to vector<16x16x16xbf16>
    %32 = vector.shape_cast %31 : vector<16x16x16xbf16> to vector<256x16xbf16>
    %33 = vector.extract_strided_slice %24 {offsets = [1, 1, 0], sizes = [16, 16, 16], strides = [1, 1, 1]} : vector<18x18x16xbf16> to vector<16x16x16xbf16>
    %34 = vector.shape_cast %33 : vector<16x16x16xbf16> to vector<256x16xbf16>
    %35 = vector.extract_strided_slice %24 {offsets = [1, 2, 0], sizes = [16, 16, 16], strides = [1, 1, 1]} : vector<18x18x16xbf16> to vector<16x16x16xbf16>
    %36 = vector.shape_cast %35 : vector<16x16x16xbf16> to vector<256x16xbf16>
    %37 = vector.extract_strided_slice %24 {offsets = [2, 0, 0], sizes = [16, 16, 16], strides = [1, 1, 1]} : vector<18x18x16xbf16> to vector<16x16x16xbf16>
    %38 = vector.shape_cast %37 : vector<16x16x16xbf16> to vector<256x16xbf16>
    %39 = vector.extract_strided_slice %24 {offsets = [2, 1, 0], sizes = [16, 16, 16], strides = [1, 1, 1]} : vector<18x18x16xbf16> to vector<16x16x16xbf16>
    %40 = vector.shape_cast %39 : vector<16x16x16xbf16> to vector<256x16xbf16>
    %41 = vector.extract_strided_slice %24 {offsets = [2, 2, 0], sizes = [16, 16, 16], strides = [1, 1, 1]} : vector<18x18x16xbf16> to vector<16x16x16xbf16>
    %42 = vector.shape_cast %41 : vector<16x16x16xbf16> to vector<256x16xbf16>
    %43 = tpu.concatenate %26, %28, %30, %32, %34, %36, %38, %40, %42 in 1 : vector<256x16xbf16>, vector<256x16xbf16>, vector<256x16xbf16>, vector<256x16xbf16>, vector<256x16xbf16>, vector<256x16xbf16>, vector<256x16xbf16>, vector<256x16xbf16>, vector<256x16xbf16> -> vector<256x144xbf16>
    %c0_9 = arith.constant 0 : index
    %c0_10 = arith.constant 0 : index
    %44 = vector.load %arg4[%c0_9, %c0_10] : memref<144x32xbf16, #tpu.memory_space<vmem>>, vector<144x32xbf16>
    %cst_11 = arith.constant dense<0.000000e+00> : vector<256x32xf32>
    %45 = tpu.matmul %43, %44, %cst_11 {dimension_numbers = #tpu.dot_dimension_numbers<[1], [0], [0], [1], [0, 0, 1, 1], [], []>} : vector<256x144xbf16>, vector<144x32xbf16>, vector<256x32xf32> -> vector<256x32xf32>
    %46 = arith.addf %22, %45 : vector<256x32xf32>
    %c0_12 = arith.constant 0 : index
    %c0_13 = arith.constant 0 : index
    %47 = vector.load %arg5[%c0_12, %c0_13] : memref<256x32xf32, #tpu.memory_space<vmem>>, vector<256x32xf32>
    tpu.vector_store %arg5[%c0_12, %c0_13], %46 {strides = array<i32>} : memref<256x32xf32, #tpu.memory_space<vmem>>, vector<256x32xf32>,
    %cst_14 = arith.constant dense<0.000000e+00> : vector<32xf32>
    %48 = vector.multi_reduction <add>, %46, %cst_14 [0] : vector<256x32xf32> to vector<32xf32>
    %49 = vector.shape_cast %48 : vector<32xf32> to vector<1x32xf32>
    %50 = arith.mulf %46, %46 : vector<256x32xf32>
    %cst_15 = arith.constant dense<0.000000e+00> : vector<32xf32>
    %51 = vector.multi_reduction <add>, %50, %cst_15 [0] : vector<256x32xf32> to vector<32xf32>
    %52 = vector.shape_cast %51 : vector<32xf32> to vector<1x32xf32>
    %53 = tpu.concatenate %49, %52 in 0 : vector<1x32xf32>, vector<1x32xf32> -> vector<2x32xf32>
    %54 = vector.shape_cast %53 : vector<2x32xf32> to vector<1x2x32xf32>
    %c0_16 = arith.constant 0 : index
    %c0_17 = arith.constant 0 : index
    %c0_18 = arith.constant 0 : index
    %55 = vector.load %arg6[%c0_16, %c0_17, %c0_18] : memref<1x2x32xf32, #tpu.memory_space<vmem>>, vector<1x2x32xf32>
    tpu.vector_store %arg6[%c0_16, %c0_17, %c0_18], %54 {strides = array<i32>} : memref<1x2x32xf32, #tpu.memory_space<vmem>>, vector<1x2x32xf32>,
    return
  }
  func.func @transform_0(%arg0: i32) -> (i32, i32, i32, i32) {
    %c0_i32 = arith.constant 0 : i32
    %c0_i32_0 = arith.constant 0 : i32
    %c0_i32_1 = arith.constant 0 : i32
    %c0_i32_2 = arith.constant 0 : i32
    return %arg0, %c0_i32, %c0_i32_0, %c0_i32_1 : i32, i32, i32, i32
  }
  func.func @transform_1(%arg0: i32) -> (i32, i32, i32, i32) {
    %c0_i32 = arith.constant 0 : i32
    %c0_i32_0 = arith.constant 0 : i32
    %c0_i32_1 = arith.constant 0 : i32
    %c0_i32_2 = arith.constant 0 : i32
    return %arg0, %c0_i32, %c0_i32_0, %c0_i32_1 : i32, i32, i32, i32
  }
  func.func @transform_2(%arg0: i32) -> (i32, i32) {
    %c0_i32 = arith.constant 0 : i32
    %c0_i32_0 = arith.constant 0 : i32
    %c0_i32_1 = arith.constant 0 : i32
    return %c0_i32, %c0_i32_0 : i32, i32
  }
  func.func @transform_3(%arg0: i32) -> (i32, i32) {
    %c0_i32 = arith.constant 0 : i32
    %c0_i32_0 = arith.constant 0 : i32
    %c0_i32_1 = arith.constant 0 : i32
    return %c0_i32, %c0_i32_0 : i32, i32
  }
  func.func @transform_4(%arg0: i32) -> (i32, i32) {
    %c0_i32 = arith.constant 0 : i32
    %c0_i32_0 = arith.constant 0 : i32
    return %arg0, %c0_i32 : i32, i32
  }
  func.func @transform_5(%arg0: i32) -> (i32, i32, i32) {
    %c0_i32 = arith.constant 0 : i32
    %c0_i32_0 = arith.constant 0 : i32
    %c0_i32_1 = arith.constant 0 : i32
    return %arg0, %c0_i32, %c0_i32_0 : i32, i32, i32
  }
}

module attributes {stable_mosaic.version = 11 : i64} {
  func.func @_bn_relu_kernel(%arg0: i32, %arg1: memref<16x512xf32, #tpu.memory_space<vmem>>, %arg2: memref<1x512xf32, #tpu.memory_space<vmem>>, %arg3: memref<1x512xf32, #tpu.memory_space<vmem>>, %arg4: memref<16x512xf32, #tpu.memory_space<vmem>>) attributes {dimension_semantics = [#tpu.dimension_semantics<parallel>], iteration_bounds = array<i64: 2>, scalar_prefetch = 0 : i64, scratch_operands = 0 : i64, tpu.core_type = #tpu.core_type<tc>, window_params = [{transform_indices = @transform_0, window_bounds = array<i64: 16, 512>}, {pipeline_mode = #tpu.pipeline_mode<synchronous>, transform_indices = @transform_1, window_bounds = array<i64: 1, 512>}, {pipeline_mode = #tpu.pipeline_mode<synchronous>, transform_indices = @transform_2, window_bounds = array<i64: 1, 512>}, {transform_indices = @transform_3, window_bounds = array<i64: 16, 512>}]} {
    %c0 = arith.constant 0 : index
    %c0_0 = arith.constant 0 : index
    %0 = vector.load %arg1[%c0, %c0_0] : memref<16x512xf32, #tpu.memory_space<vmem>>, vector<16x512xf32>
    %c0_1 = arith.constant 0 : index
    %c0_2 = arith.constant 0 : index
    %1 = vector.load %arg2[%c0_1, %c0_2] : memref<1x512xf32, #tpu.memory_space<vmem>>, vector<1x512xf32>
    %2 = vector.broadcast %1 : vector<1x512xf32> to vector<16x512xf32>
    %3 = arith.mulf %0, %2 : vector<16x512xf32>
    %c0_3 = arith.constant 0 : index
    %c0_4 = arith.constant 0 : index
    %4 = vector.load %arg3[%c0_3, %c0_4] : memref<1x512xf32, #tpu.memory_space<vmem>>, vector<1x512xf32>
    %5 = vector.broadcast %4 : vector<1x512xf32> to vector<16x512xf32>
    %6 = arith.addf %3, %5 : vector<16x512xf32>
    %cst = arith.constant 0.000000e+00 : f32
    %7 = vector.broadcast %cst : f32 to vector<16x512xf32>
    %8 = arith.maximumf %6, %7 : vector<16x512xf32>
    %c0_5 = arith.constant 0 : index
    %c0_6 = arith.constant 0 : index
    %9 = vector.load %arg4[%c0_5, %c0_6] : memref<16x512xf32, #tpu.memory_space<vmem>>, vector<16x512xf32>
    tpu.vector_store %arg4[%c0_5, %c0_6], %8 {strides = array<i32>} : memref<16x512xf32, #tpu.memory_space<vmem>>, vector<16x512xf32>,
    return
  }
  func.func @transform_0(%arg0: i32) -> (i32, i32) {
    %c0_i32 = arith.constant 0 : i32
    %c0_i32_0 = arith.constant 0 : i32
    return %arg0, %c0_i32 : i32, i32
  }
  func.func @transform_1(%arg0: i32) -> (i32, i32) {
    %c0_i32 = arith.constant 0 : i32
    %c0_i32_0 = arith.constant 0 : i32
    %c0_i32_1 = arith.constant 0 : i32
    return %c0_i32, %c0_i32_0 : i32, i32
  }
  func.func @transform_2(%arg0: i32) -> (i32, i32) {
    %c0_i32 = arith.constant 0 : i32
    %c0_i32_0 = arith.constant 0 : i32
    %c0_i32_1 = arith.constant 0 : i32
    return %c0_i32, %c0_i32_0 : i32, i32
  }
  func.func @transform_3(%arg0: i32) -> (i32, i32) {
    %c0_i32 = arith.constant 0 : i32
    %c0_i32_0 = arith.constant 0 : i32
    return %arg0, %c0_i32 : i32, i32
  }
}

module attributes {stable_mosaic.version = 11 : i64} {
  func.func @kernel(%arg0: i32, %arg1: memref<1x34x34x32xbf16, #tpu.memory_space<vmem>>, %arg2: memref<1x34x34x16xbf16, #tpu.memory_space<vmem>>, %arg3: memref<288x32xbf16, #tpu.memory_space<vmem>>, %arg4: memref<144x32xbf16, #tpu.memory_space<vmem>>, %arg5: memref<1024x32xf32, #tpu.memory_space<vmem>>, %arg6: memref<1x2x32xf32, #tpu.memory_space<vmem>>) attributes {dimension_semantics = [#tpu.dimension_semantics<parallel>], iteration_bounds = array<i64: 2>, scalar_prefetch = 0 : i64, scratch_operands = 0 : i64, tpu.core_type = #tpu.core_type<tc>, window_params = [{transform_indices = @transform_0, window_bounds = array<i64: 1, 34, 34, 32>}, {transform_indices = @transform_1, window_bounds = array<i64: 1, 34, 34, 16>}, {pipeline_mode = #tpu.pipeline_mode<synchronous>, transform_indices = @transform_2, window_bounds = array<i64: 288, 32>}, {pipeline_mode = #tpu.pipeline_mode<synchronous>, transform_indices = @transform_3, window_bounds = array<i64: 144, 32>}, {transform_indices = @transform_4, window_bounds = array<i64: 1024, 32>}, {transform_indices = @transform_5, window_bounds = array<i64: 1, 2, 32>}]} {
    %c0 = arith.constant 0 : index
    %c0_0 = arith.constant 0 : index
    %c0_1 = arith.constant 0 : index
    %c0_2 = arith.constant 0 : index
    %0 = vector.load %arg1[%c0, %c0_0, %c0_1, %c0_2] : memref<1x34x34x32xbf16, #tpu.memory_space<vmem>>, vector<1x34x34x32xbf16>
    %1 = vector.shape_cast %0 : vector<1x34x34x32xbf16> to vector<34x34x32xbf16>
    %2 = vector.extract_strided_slice %1 {offsets = [0, 0, 0], sizes = [32, 32, 32], strides = [1, 1, 1]} : vector<34x34x32xbf16> to vector<32x32x32xbf16>
    %3 = vector.shape_cast %2 : vector<32x32x32xbf16> to vector<1024x32xbf16>
    %4 = vector.extract_strided_slice %1 {offsets = [0, 1, 0], sizes = [32, 32, 32], strides = [1, 1, 1]} : vector<34x34x32xbf16> to vector<32x32x32xbf16>
    %5 = vector.shape_cast %4 : vector<32x32x32xbf16> to vector<1024x32xbf16>
    %6 = vector.extract_strided_slice %1 {offsets = [0, 2, 0], sizes = [32, 32, 32], strides = [1, 1, 1]} : vector<34x34x32xbf16> to vector<32x32x32xbf16>
    %7 = vector.shape_cast %6 : vector<32x32x32xbf16> to vector<1024x32xbf16>
    %8 = vector.extract_strided_slice %1 {offsets = [1, 0, 0], sizes = [32, 32, 32], strides = [1, 1, 1]} : vector<34x34x32xbf16> to vector<32x32x32xbf16>
    %9 = vector.shape_cast %8 : vector<32x32x32xbf16> to vector<1024x32xbf16>
    %10 = vector.extract_strided_slice %1 {offsets = [1, 1, 0], sizes = [32, 32, 32], strides = [1, 1, 1]} : vector<34x34x32xbf16> to vector<32x32x32xbf16>
    %11 = vector.shape_cast %10 : vector<32x32x32xbf16> to vector<1024x32xbf16>
    %12 = vector.extract_strided_slice %1 {offsets = [1, 2, 0], sizes = [32, 32, 32], strides = [1, 1, 1]} : vector<34x34x32xbf16> to vector<32x32x32xbf16>
    %13 = vector.shape_cast %12 : vector<32x32x32xbf16> to vector<1024x32xbf16>
    %14 = vector.extract_strided_slice %1 {offsets = [2, 0, 0], sizes = [32, 32, 32], strides = [1, 1, 1]} : vector<34x34x32xbf16> to vector<32x32x32xbf16>
    %15 = vector.shape_cast %14 : vector<32x32x32xbf16> to vector<1024x32xbf16>
    %16 = vector.extract_strided_slice %1 {offsets = [2, 1, 0], sizes = [32, 32, 32], strides = [1, 1, 1]} : vector<34x34x32xbf16> to vector<32x32x32xbf16>
    %17 = vector.shape_cast %16 : vector<32x32x32xbf16> to vector<1024x32xbf16>
    %18 = vector.extract_strided_slice %1 {offsets = [2, 2, 0], sizes = [32, 32, 32], strides = [1, 1, 1]} : vector<34x34x32xbf16> to vector<32x32x32xbf16>
    %19 = vector.shape_cast %18 : vector<32x32x32xbf16> to vector<1024x32xbf16>
    %20 = tpu.concatenate %3, %5, %7, %9, %11, %13, %15, %17, %19 in 1 : vector<1024x32xbf16>, vector<1024x32xbf16>, vector<1024x32xbf16>, vector<1024x32xbf16>, vector<1024x32xbf16>, vector<1024x32xbf16>, vector<1024x32xbf16>, vector<1024x32xbf16>, vector<1024x32xbf16> -> vector<1024x288xbf16>
    %c0_3 = arith.constant 0 : index
    %c0_4 = arith.constant 0 : index
    %21 = vector.load %arg3[%c0_3, %c0_4] : memref<288x32xbf16, #tpu.memory_space<vmem>>, vector<288x32xbf16>
    %cst = arith.constant dense<0.000000e+00> : vector<1024x32xf32>
    %22 = tpu.matmul %20, %21, %cst {dimension_numbers = #tpu.dot_dimension_numbers<[1], [0], [0], [1], [0, 0, 1, 1], [], []>} : vector<1024x288xbf16>, vector<288x32xbf16>, vector<1024x32xf32> -> vector<1024x32xf32>
    %c0_5 = arith.constant 0 : index
    %c0_6 = arith.constant 0 : index
    %c0_7 = arith.constant 0 : index
    %c0_8 = arith.constant 0 : index
    %23 = vector.load %arg2[%c0_5, %c0_6, %c0_7, %c0_8] : memref<1x34x34x16xbf16, #tpu.memory_space<vmem>>, vector<1x34x34x16xbf16>
    %24 = vector.shape_cast %23 : vector<1x34x34x16xbf16> to vector<34x34x16xbf16>
    %25 = vector.extract_strided_slice %24 {offsets = [0, 0, 0], sizes = [32, 32, 16], strides = [1, 1, 1]} : vector<34x34x16xbf16> to vector<32x32x16xbf16>
    %26 = vector.shape_cast %25 : vector<32x32x16xbf16> to vector<1024x16xbf16>
    %27 = vector.extract_strided_slice %24 {offsets = [0, 1, 0], sizes = [32, 32, 16], strides = [1, 1, 1]} : vector<34x34x16xbf16> to vector<32x32x16xbf16>
    %28 = vector.shape_cast %27 : vector<32x32x16xbf16> to vector<1024x16xbf16>
    %29 = vector.extract_strided_slice %24 {offsets = [0, 2, 0], sizes = [32, 32, 16], strides = [1, 1, 1]} : vector<34x34x16xbf16> to vector<32x32x16xbf16>
    %30 = vector.shape_cast %29 : vector<32x32x16xbf16> to vector<1024x16xbf16>
    %31 = vector.extract_strided_slice %24 {offsets = [1, 0, 0], sizes = [32, 32, 16], strides = [1, 1, 1]} : vector<34x34x16xbf16> to vector<32x32x16xbf16>
    %32 = vector.shape_cast %31 : vector<32x32x16xbf16> to vector<1024x16xbf16>
    %33 = vector.extract_strided_slice %24 {offsets = [1, 1, 0], sizes = [32, 32, 16], strides = [1, 1, 1]} : vector<34x34x16xbf16> to vector<32x32x16xbf16>
    %34 = vector.shape_cast %33 : vector<32x32x16xbf16> to vector<1024x16xbf16>
    %35 = vector.extract_strided_slice %24 {offsets = [1, 2, 0], sizes = [32, 32, 16], strides = [1, 1, 1]} : vector<34x34x16xbf16> to vector<32x32x16xbf16>
    %36 = vector.shape_cast %35 : vector<32x32x16xbf16> to vector<1024x16xbf16>
    %37 = vector.extract_strided_slice %24 {offsets = [2, 0, 0], sizes = [32, 32, 16], strides = [1, 1, 1]} : vector<34x34x16xbf16> to vector<32x32x16xbf16>
    %38 = vector.shape_cast %37 : vector<32x32x16xbf16> to vector<1024x16xbf16>
    %39 = vector.extract_strided_slice %24 {offsets = [2, 1, 0], sizes = [32, 32, 16], strides = [1, 1, 1]} : vector<34x34x16xbf16> to vector<32x32x16xbf16>
    %40 = vector.shape_cast %39 : vector<32x32x16xbf16> to vector<1024x16xbf16>
    %41 = vector.extract_strided_slice %24 {offsets = [2, 2, 0], sizes = [32, 32, 16], strides = [1, 1, 1]} : vector<34x34x16xbf16> to vector<32x32x16xbf16>
    %42 = vector.shape_cast %41 : vector<32x32x16xbf16> to vector<1024x16xbf16>
    %43 = tpu.concatenate %26, %28, %30, %32, %34, %36, %38, %40, %42 in 1 : vector<1024x16xbf16>, vector<1024x16xbf16>, vector<1024x16xbf16>, vector<1024x16xbf16>, vector<1024x16xbf16>, vector<1024x16xbf16>, vector<1024x16xbf16>, vector<1024x16xbf16>, vector<1024x16xbf16> -> vector<1024x144xbf16>
    %c0_9 = arith.constant 0 : index
    %c0_10 = arith.constant 0 : index
    %44 = vector.load %arg4[%c0_9, %c0_10] : memref<144x32xbf16, #tpu.memory_space<vmem>>, vector<144x32xbf16>
    %cst_11 = arith.constant dense<0.000000e+00> : vector<1024x32xf32>
    %45 = tpu.matmul %43, %44, %cst_11 {dimension_numbers = #tpu.dot_dimension_numbers<[1], [0], [0], [1], [0, 0, 1, 1], [], []>} : vector<1024x144xbf16>, vector<144x32xbf16>, vector<1024x32xf32> -> vector<1024x32xf32>
    %46 = arith.addf %22, %45 : vector<1024x32xf32>
    %c0_12 = arith.constant 0 : index
    %c0_13 = arith.constant 0 : index
    %47 = vector.load %arg5[%c0_12, %c0_13] : memref<1024x32xf32, #tpu.memory_space<vmem>>, vector<1024x32xf32>
    tpu.vector_store %arg5[%c0_12, %c0_13], %46 {strides = array<i32>} : memref<1024x32xf32, #tpu.memory_space<vmem>>, vector<1024x32xf32>,
    %cst_14 = arith.constant dense<0.000000e+00> : vector<32xf32>
    %48 = vector.multi_reduction <add>, %46, %cst_14 [0] : vector<1024x32xf32> to vector<32xf32>
    %49 = vector.shape_cast %48 : vector<32xf32> to vector<1x32xf32>
    %50 = arith.mulf %46, %46 : vector<1024x32xf32>
    %cst_15 = arith.constant dense<0.000000e+00> : vector<32xf32>
    %51 = vector.multi_reduction <add>, %50, %cst_15 [0] : vector<1024x32xf32> to vector<32xf32>
    %52 = vector.shape_cast %51 : vector<32xf32> to vector<1x32xf32>
    %53 = tpu.concatenate %49, %52 in 0 : vector<1x32xf32>, vector<1x32xf32> -> vector<2x32xf32>
    %54 = vector.shape_cast %53 : vector<2x32xf32> to vector<1x2x32xf32>
    %c0_16 = arith.constant 0 : index
    %c0_17 = arith.constant 0 : index
    %c0_18 = arith.constant 0 : index
    %55 = vector.load %arg6[%c0_16, %c0_17, %c0_18] : memref<1x2x32xf32, #tpu.memory_space<vmem>>, vector<1x2x32xf32>
    tpu.vector_store %arg6[%c0_16, %c0_17, %c0_18], %54 {strides = array<i32>} : memref<1x2x32xf32, #tpu.memory_space<vmem>>, vector<1x2x32xf32>,
    return
  }
  func.func @transform_0(%arg0: i32) -> (i32, i32, i32, i32) {
    %c0_i32 = arith.constant 0 : i32
    %c0_i32_0 = arith.constant 0 : i32
    %c0_i32_1 = arith.constant 0 : i32
    %c0_i32_2 = arith.constant 0 : i32
    return %arg0, %c0_i32, %c0_i32_0, %c0_i32_1 : i32, i32, i32, i32
  }
  func.func @transform_1(%arg0: i32) -> (i32, i32, i32, i32) {
    %c0_i32 = arith.constant 0 : i32
    %c0_i32_0 = arith.constant 0 : i32
    %c0_i32_1 = arith.constant 0 : i32
    %c0_i32_2 = arith.constant 0 : i32
    return %arg0, %c0_i32, %c0_i32_0, %c0_i32_1 : i32, i32, i32, i32
  }
  func.func @transform_2(%arg0: i32) -> (i32, i32) {
    %c0_i32 = arith.constant 0 : i32
    %c0_i32_0 = arith.constant 0 : i32
    %c0_i32_1 = arith.constant 0 : i32
    return %c0_i32, %c0_i32_0 : i32, i32
  }
  func.func @transform_3(%arg0: i32) -> (i32, i32) {
    %c0_i32 = arith.constant 0 : i32
    %c0_i32_0 = arith.constant 0 : i32
    %c0_i32_1 = arith.constant 0 : i32
    return %c0_i32, %c0_i32_0 : i32, i32
  }
  func.func @transform_4(%arg0: i32) -> (i32, i32) {
    %c0_i32 = arith.constant 0 : i32
    %c0_i32_0 = arith.constant 0 : i32
    return %arg0, %c0_i32 : i32, i32
  }
  func.func @transform_5(%arg0: i32) -> (i32, i32, i32) {
    %c0_i32 = arith.constant 0 : i32
    %c0_i32_0 = arith.constant 0 : i32
    %c0_i32_1 = arith.constant 0 : i32
    return %arg0, %c0_i32, %c0_i32_0 : i32, i32, i32
  }
}

module attributes {stable_mosaic.version = 11 : i64} {
  func.func @_bn_relu_pool_kernel(%arg0: i32, %arg1: memref<1024x32xf32, #tpu.memory_space<vmem>>, %arg2: memref<1x32xf32, #tpu.memory_space<vmem>>, %arg3: memref<1x32xf32, #tpu.memory_space<vmem>>, %arg4: memref<1024x32xf32, #tpu.memory_space<vmem>>, %arg5: memref<1x2x32xf32, #tpu.memory_space<vmem>>) attributes {dimension_semantics = [#tpu.dimension_semantics<parallel>], iteration_bounds = array<i64: 2>, scalar_prefetch = 0 : i64, scratch_operands = 0 : i64, tpu.core_type = #tpu.core_type<tc>, window_params = [{transform_indices = @transform_0, window_bounds = array<i64: 1024, 32>}, {pipeline_mode = #tpu.pipeline_mode<synchronous>, transform_indices = @transform_1, window_bounds = array<i64: 1, 32>}, {pipeline_mode = #tpu.pipeline_mode<synchronous>, transform_indices = @transform_2, window_bounds = array<i64: 1, 32>}, {transform_indices = @transform_3, window_bounds = array<i64: 1024, 32>}, {transform_indices = @transform_4, window_bounds = array<i64: 1, 2, 32>}]} {
    %c0 = arith.constant 0 : index
    %c0_0 = arith.constant 0 : index
    %0 = vector.load %arg1[%c0, %c0_0] : memref<1024x32xf32, #tpu.memory_space<vmem>>, vector<1024x32xf32>
    %c0_1 = arith.constant 0 : index
    %c0_2 = arith.constant 0 : index
    %1 = vector.load %arg2[%c0_1, %c0_2] : memref<1x32xf32, #tpu.memory_space<vmem>>, vector<1x32xf32>
    %2 = vector.broadcast %1 : vector<1x32xf32> to vector<1024x32xf32>
    %3 = arith.mulf %0, %2 : vector<1024x32xf32>
    %c0_3 = arith.constant 0 : index
    %c0_4 = arith.constant 0 : index
    %4 = vector.load %arg3[%c0_3, %c0_4] : memref<1x32xf32, #tpu.memory_space<vmem>>, vector<1x32xf32>
    %5 = vector.broadcast %4 : vector<1x32xf32> to vector<1024x32xf32>
    %6 = arith.addf %3, %5 : vector<1024x32xf32>
    %cst = arith.constant 0.000000e+00 : f32
    %7 = vector.broadcast %cst : f32 to vector<1024x32xf32>
    %8 = arith.maximumf %6, %7 : vector<1024x32xf32>
    %c0_5 = arith.constant 0 : index
    %c0_6 = arith.constant 0 : index
    %9 = vector.load %arg4[%c0_5, %c0_6] : memref<1024x32xf32, #tpu.memory_space<vmem>>, vector<1024x32xf32>
    tpu.vector_store %arg4[%c0_5, %c0_6], %8 {strides = array<i32>} : memref<1024x32xf32, #tpu.memory_space<vmem>>, vector<1024x32xf32>,
    %cst_7 = arith.constant dense<0.000000e+00> : vector<32xf32>
    %10 = vector.multi_reduction <add>, %8, %cst_7 [0] : vector<1024x32xf32> to vector<32xf32>
    %11 = vector.shape_cast %10 : vector<32xf32> to vector<1x32xf32>
    %cst_8 = arith.constant dense<0xFF800000> : vector<32xf32>
    %12 = vector.multi_reduction <maximumf>, %8, %cst_8 [0] : vector<1024x32xf32> to vector<32xf32>
    %13 = vector.shape_cast %12 : vector<32xf32> to vector<1x32xf32>
    %14 = tpu.concatenate %11, %13 in 0 : vector<1x32xf32>, vector<1x32xf32> -> vector<2x32xf32>
    %15 = vector.shape_cast %14 : vector<2x32xf32> to vector<1x2x32xf32>
    %c0_9 = arith.constant 0 : index
    %c0_10 = arith.constant 0 : index
    %c0_11 = arith.constant 0 : index
    %16 = vector.load %arg5[%c0_9, %c0_10, %c0_11] : memref<1x2x32xf32, #tpu.memory_space<vmem>>, vector<1x2x32xf32>
    tpu.vector_store %arg5[%c0_9, %c0_10, %c0_11], %15 {strides = array<i32>} : memref<1x2x32xf32, #tpu.memory_space<vmem>>, vector<1x2x32xf32>,
    return
  }
  func.func @transform_0(%arg0: i32) -> (i32, i32) {
    %c0_i32 = arith.constant 0 : i32
    %c0_i32_0 = arith.constant 0 : i32
    return %arg0, %c0_i32 : i32, i32
  }
  func.func @transform_1(%arg0: i32) -> (i32, i32) {
    %c0_i32 = arith.constant 0 : i32
    %c0_i32_0 = arith.constant 0 : i32
    %c0_i32_1 = arith.constant 0 : i32
    return %c0_i32, %c0_i32_0 : i32, i32
  }
  func.func @transform_2(%arg0: i32) -> (i32, i32) {
    %c0_i32 = arith.constant 0 : i32
    %c0_i32_0 = arith.constant 0 : i32
    %c0_i32_1 = arith.constant 0 : i32
    return %c0_i32, %c0_i32_0 : i32, i32
  }
  func.func @transform_3(%arg0: i32) -> (i32, i32) {
    %c0_i32 = arith.constant 0 : i32
    %c0_i32_0 = arith.constant 0 : i32
    return %arg0, %c0_i32 : i32, i32
  }
  func.func @transform_4(%arg0: i32) -> (i32, i32, i32) {
    %c0_i32 = arith.constant 0 : i32
    %c0_i32_0 = arith.constant 0 : i32
    %c0_i32_1 = arith.constant 0 : i32
    return %arg0, %c0_i32, %c0_i32_0 : i32, i32, i32
  }
}

module attributes {stable_mosaic.version = 11 : i64} {
  func.func @_attention_kernel(%arg0: i32, %arg1: memref<1x32x32x32xf32, #tpu.memory_space<vmem>>, %arg2: memref<1x1x32xf32, #tpu.memory_space<vmem>>, %arg3: memref<2x49xf32, #tpu.memory_space<smem>>, %arg4: memref<1x32x32x32xf32, #tpu.memory_space<vmem>>) attributes {dimension_semantics = [#tpu.dimension_semantics<parallel>], iteration_bounds = array<i64: 2>, scalar_prefetch = 0 : i64, scratch_operands = 0 : i64, tpu.core_type = #tpu.core_type<tc>, window_params = [{transform_indices = @transform_0, window_bounds = array<i64: 1, 32, 32, 32>}, {transform_indices = @transform_1, window_bounds = array<i64: 1, 1, 32>}, {transform_indices = @transform_2, window_bounds = array<i64: 2, 49>}, {transform_indices = @transform_3, window_bounds = array<i64: 1, 32, 32, 32>}]} {
    %c0 = arith.constant 0 : index
    %c0_0 = arith.constant 0 : index
    %c0_1 = arith.constant 0 : index
    %c0_2 = arith.constant 0 : index
    %0 = vector.load %arg1[%c0, %c0_0, %c0_1, %c0_2] : memref<1x32x32x32xf32, #tpu.memory_space<vmem>>, vector<1x32x32x32xf32>
    %1 = vector.shape_cast %0 : vector<1x32x32x32xf32> to vector<32x32x32xf32>
    %c0_3 = arith.constant 0 : index
    %c0_4 = arith.constant 0 : index
    %c0_5 = arith.constant 0 : index
    %2 = vector.load %arg2[%c0_3, %c0_4, %c0_5] : memref<1x1x32xf32, #tpu.memory_space<vmem>>, vector<1x1x32xf32>
    %3 = vector.broadcast %2 : vector<1x1x32xf32> to vector<32x32x32xf32>
    %4 = arith.mulf %1, %3 : vector<32x32x32xf32>
    %cst = arith.constant dense<0.000000e+00> : vector<32x32xf32>
    %5 = vector.multi_reduction <add>, %4, %cst [2] : vector<32x32x32xf32> to vector<32x32xf32>
    %6 = vector.shape_cast %5 : vector<32x32xf32> to vector<32x32x1xf32>
    %cst_6 = arith.constant 3.200000e+01 : f32
    %7 = vector.broadcast %cst_6 : f32 to vector<32x32x1xf32>
    %8 = arith.divf %6, %7 : vector<32x32x1xf32>
    %cst_7 = arith.constant dense<0xFF800000> : vector<32x32xf32>
    %9 = vector.multi_reduction <maximumf>, %4, %cst_7 [2] : vector<32x32x32xf32> to vector<32x32xf32>
    %10 = vector.shape_cast %9 : vector<32x32xf32> to vector<32x32x1xf32>
    %cst_8 = arith.constant 0.000000e+00 : f32
    %11 = vector.broadcast %cst_8 : f32 to vector<3x32x1xf32>
    %12 = tpu.concatenate %11, %8, %11 in 0 : vector<3x32x1xf32>, vector<32x32x1xf32>, vector<3x32x1xf32> -> vector<38x32x1xf32>
    %cst_9 = arith.constant 0.000000e+00 : f32
    %13 = vector.broadcast %cst_9 : f32 to vector<38x3x1xf32>
    %14 = tpu.concatenate %13, %12, %13 in 1 : vector<38x3x1xf32>, vector<38x32x1xf32>, vector<38x3x1xf32> -> vector<38x38x1xf32>
    %cst_10 = arith.constant 0.000000e+00 : f32
    %15 = vector.broadcast %cst_10 : f32 to vector<3x32x1xf32>
    %16 = tpu.concatenate %15, %10, %15 in 0 : vector<3x32x1xf32>, vector<32x32x1xf32>, vector<3x32x1xf32> -> vector<38x32x1xf32>
    %cst_11 = arith.constant 0.000000e+00 : f32
    %17 = vector.broadcast %cst_11 : f32 to vector<38x3x1xf32>
    %18 = tpu.concatenate %17, %16, %17 in 1 : vector<38x3x1xf32>, vector<38x32x1xf32>, vector<38x3x1xf32> -> vector<38x38x1xf32>
    %cst_12 = arith.constant 0.000000e+00 : f32
    %19 = vector.broadcast %cst_12 : f32 to vector<32x32x1xf32>
    %c0_13 = arith.constant 0 : index
    %c0_14 = arith.constant 0 : index
    %20 = memref.load %arg3[%c0_13, %c0_14] : memref<2x49xf32, #tpu.memory_space<smem>>
    %21 = vector.extract_strided_slice %14 {offsets = [0, 0, 0], sizes = [32, 32, 1], strides = [1, 1, 1]} : vector<38x38x1xf32> to vector<32x32x1xf32>
    %22 = vector.broadcast %20 : f32 to vector<32x32x1xf32>
    %23 = arith.mulf %22, %21 : vector<32x32x1xf32>
    %24 = arith.addf %19, %23 : vector<32x32x1xf32>
    %c1 = arith.constant 1 : index
    %c0_15 = arith.constant 0 : index
    %25 = memref.load %arg3[%c1, %c0_15] : memref<2x49xf32, #tpu.memory_space<smem>>
    %26 = vector.extract_strided_slice %18 {offsets = [0, 0, 0], sizes = [32, 32, 1], strides = [1, 1, 1]} : vector<38x38x1xf32> to vector<32x32x1xf32>
    %27 = vector.broadcast %25 : f32 to vector<32x32x1xf32>
    %28 = arith.mulf %27, %26 : vector<32x32x1xf32>
    %29 = arith.addf %24, %28 : vector<32x32x1xf32>
    %c0_16 = arith.constant 0 : index
    %c1_17 = arith.constant 1 : index
    %30 = memref.load %arg3[%c0_16, %c1_17] : memref<2x49xf32, #tpu.memory_space<smem>>
    %31 = vector.extract_strided_slice %14 {offsets = [0, 1, 0], sizes = [32, 32, 1], strides = [1, 1, 1]} : vector<38x38x1xf32> to vector<32x32x1xf32>
    %32 = vector.broadcast %30 : f32 to vector<32x32x1xf32>
    %33 = arith.mulf %32, %31 : vector<32x32x1xf32>
    %34 = arith.addf %29, %33 : vector<32x32x1xf32>
    %c1_18 = arith.constant 1 : index
    %c1_19 = arith.constant 1 : index
    %35 = memref.load %arg3[%c1_18, %c1_19] : memref<2x49xf32, #tpu.memory_space<smem>>
    %36 = vector.extract_strided_slice %18 {offsets = [0, 1, 0], sizes = [32, 32, 1], strides = [1, 1, 1]} : vector<38x38x1xf32> to vector<32x32x1xf32>
    %37 = vector.broadcast %35 : f32 to vector<32x32x1xf32>
    %38 = arith.mulf %37, %36 : vector<32x32x1xf32>
    %39 = arith.addf %34, %38 : vector<32x32x1xf32>
    %c0_20 = arith.constant 0 : index
    %c2 = arith.constant 2 : index
    %40 = memref.load %arg3[%c0_20, %c2] : memref<2x49xf32, #tpu.memory_space<smem>>
    %41 = vector.extract_strided_slice %14 {offsets = [0, 2, 0], sizes = [32, 32, 1], strides = [1, 1, 1]} : vector<38x38x1xf32> to vector<32x32x1xf32>
    %42 = vector.broadcast %40 : f32 to vector<32x32x1xf32>
    %43 = arith.mulf %42, %41 : vector<32x32x1xf32>
    %44 = arith.addf %39, %43 : vector<32x32x1xf32>
    %c1_21 = arith.constant 1 : index
    %c2_22 = arith.constant 2 : index
    %45 = memref.load %arg3[%c1_21, %c2_22] : memref<2x49xf32, #tpu.memory_space<smem>>
    %46 = vector.extract_strided_slice %18 {offsets = [0, 2, 0], sizes = [32, 32, 1], strides = [1, 1, 1]} : vector<38x38x1xf32> to vector<32x32x1xf32>
    %47 = vector.broadcast %45 : f32 to vector<32x32x1xf32>
    %48 = arith.mulf %47, %46 : vector<32x32x1xf32>
    %49 = arith.addf %44, %48 : vector<32x32x1xf32>
    %c0_23 = arith.constant 0 : index
    %c3 = arith.constant 3 : index
    %50 = memref.load %arg3[%c0_23, %c3] : memref<2x49xf32, #tpu.memory_space<smem>>
    %51 = vector.extract_strided_slice %14 {offsets = [0, 3, 0], sizes = [32, 32, 1], strides = [1, 1, 1]} : vector<38x38x1xf32> to vector<32x32x1xf32>
    %52 = vector.broadcast %50 : f32 to vector<32x32x1xf32>
    %53 = arith.mulf %52, %51 : vector<32x32x1xf32>
    %54 = arith.addf %49, %53 : vector<32x32x1xf32>
    %c1_24 = arith.constant 1 : index
    %c3_25 = arith.constant 3 : index
    %55 = memref.load %arg3[%c1_24, %c3_25] : memref<2x49xf32, #tpu.memory_space<smem>>
    %56 = vector.extract_strided_slice %18 {offsets = [0, 3, 0], sizes = [32, 32, 1], strides = [1, 1, 1]} : vector<38x38x1xf32> to vector<32x32x1xf32>
    %57 = vector.broadcast %55 : f32 to vector<32x32x1xf32>
    %58 = arith.mulf %57, %56 : vector<32x32x1xf32>
    %59 = arith.addf %54, %58 : vector<32x32x1xf32>
    %c0_26 = arith.constant 0 : index
    %c4 = arith.constant 4 : index
    %60 = memref.load %arg3[%c0_26, %c4] : memref<2x49xf32, #tpu.memory_space<smem>>
    %61 = vector.extract_strided_slice %14 {offsets = [0, 4, 0], sizes = [32, 32, 1], strides = [1, 1, 1]} : vector<38x38x1xf32> to vector<32x32x1xf32>
    %62 = vector.broadcast %60 : f32 to vector<32x32x1xf32>
    %63 = arith.mulf %62, %61 : vector<32x32x1xf32>
    %64 = arith.addf %59, %63 : vector<32x32x1xf32>
    %c1_27 = arith.constant 1 : index
    %c4_28 = arith.constant 4 : index
    %65 = memref.load %arg3[%c1_27, %c4_28] : memref<2x49xf32, #tpu.memory_space<smem>>
    %66 = vector.extract_strided_slice %18 {offsets = [0, 4, 0], sizes = [32, 32, 1], strides = [1, 1, 1]} : vector<38x38x1xf32> to vector<32x32x1xf32>
    %67 = vector.broadcast %65 : f32 to vector<32x32x1xf32>
    %68 = arith.mulf %67, %66 : vector<32x32x1xf32>
    %69 = arith.addf %64, %68 : vector<32x32x1xf32>
    %c0_29 = arith.constant 0 : index
    %c5 = arith.constant 5 : index
    %70 = memref.load %arg3[%c0_29, %c5] : memref<2x49xf32, #tpu.memory_space<smem>>
    %71 = vector.extract_strided_slice %14 {offsets = [0, 5, 0], sizes = [32, 32, 1], strides = [1, 1, 1]} : vector<38x38x1xf32> to vector<32x32x1xf32>
    %72 = vector.broadcast %70 : f32 to vector<32x32x1xf32>
    %73 = arith.mulf %72, %71 : vector<32x32x1xf32>
    %74 = arith.addf %69, %73 : vector<32x32x1xf32>
    %c1_30 = arith.constant 1 : index
    %c5_31 = arith.constant 5 : index
    %75 = memref.load %arg3[%c1_30, %c5_31] : memref<2x49xf32, #tpu.memory_space<smem>>
    %76 = vector.extract_strided_slice %18 {offsets = [0, 5, 0], sizes = [32, 32, 1], strides = [1, 1, 1]} : vector<38x38x1xf32> to vector<32x32x1xf32>
    %77 = vector.broadcast %75 : f32 to vector<32x32x1xf32>
    %78 = arith.mulf %77, %76 : vector<32x32x1xf32>
    %79 = arith.addf %74, %78 : vector<32x32x1xf32>
    %c0_32 = arith.constant 0 : index
    %c6 = arith.constant 6 : index
    %80 = memref.load %arg3[%c0_32, %c6] : memref<2x49xf32, #tpu.memory_space<smem>>
    %81 = vector.extract_strided_slice %14 {offsets = [0, 6, 0], sizes = [32, 32, 1], strides = [1, 1, 1]} : vector<38x38x1xf32> to vector<32x32x1xf32>
    %82 = vector.broadcast %80 : f32 to vector<32x32x1xf32>
    %83 = arith.mulf %82, %81 : vector<32x32x1xf32>
    %84 = arith.addf %79, %83 : vector<32x32x1xf32>
    %c1_33 = arith.constant 1 : index
    %c6_34 = arith.constant 6 : index
    %85 = memref.load %arg3[%c1_33, %c6_34] : memref<2x49xf32, #tpu.memory_space<smem>>
    %86 = vector.extract_strided_slice %18 {offsets = [0, 6, 0], sizes = [32, 32, 1], strides = [1, 1, 1]} : vector<38x38x1xf32> to vector<32x32x1xf32>
    %87 = vector.broadcast %85 : f32 to vector<32x32x1xf32>
    %88 = arith.mulf %87, %86 : vector<32x32x1xf32>
    %89 = arith.addf %84, %88 : vector<32x32x1xf32>
    %c0_35 = arith.constant 0 : index
    %c7 = arith.constant 7 : index
    %90 = memref.load %arg3[%c0_35, %c7] : memref<2x49xf32, #tpu.memory_space<smem>>
    %91 = vector.extract_strided_slice %14 {offsets = [1, 0, 0], sizes = [32, 32, 1], strides = [1, 1, 1]} : vector<38x38x1xf32> to vector<32x32x1xf32>
    %92 = vector.broadcast %90 : f32 to vector<32x32x1xf32>
    %93 = arith.mulf %92, %91 : vector<32x32x1xf32>
    %94 = arith.addf %89, %93 : vector<32x32x1xf32>
    %c1_36 = arith.constant 1 : index
    %c7_37 = arith.constant 7 : index
    %95 = memref.load %arg3[%c1_36, %c7_37] : memref<2x49xf32, #tpu.memory_space<smem>>
    %96 = vector.extract_strided_slice %18 {offsets = [1, 0, 0], sizes = [32, 32, 1], strides = [1, 1, 1]} : vector<38x38x1xf32> to vector<32x32x1xf32>
    %97 = vector.broadcast %95 : f32 to vector<32x32x1xf32>
    %98 = arith.mulf %97, %96 : vector<32x32x1xf32>
    %99 = arith.addf %94, %98 : vector<32x32x1xf32>
    %c0_38 = arith.constant 0 : index
    %c8 = arith.constant 8 : index
    %100 = memref.load %arg3[%c0_38, %c8] : memref<2x49xf32, #tpu.memory_space<smem>>
    %101 = vector.extract_strided_slice %14 {offsets = [1, 1, 0], sizes = [32, 32, 1], strides = [1, 1, 1]} : vector<38x38x1xf32> to vector<32x32x1xf32>
    %102 = vector.broadcast %100 : f32 to vector<32x32x1xf32>
    %103 = arith.mulf %102, %101 : vector<32x32x1xf32>
    %104 = arith.addf %99, %103 : vector<32x32x1xf32>
    %c1_39 = arith.constant 1 : index
    %c8_40 = arith.constant 8 : index
    %105 = memref.load %arg3[%c1_39, %c8_40] : memref<2x49xf32, #tpu.memory_space<smem>>
    %106 = vector.extract_strided_slice %18 {offsets = [1, 1, 0], sizes = [32, 32, 1], strides = [1, 1, 1]} : vector<38x38x1xf32> to vector<32x32x1xf32>
    %107 = vector.broadcast %105 : f32 to vector<32x32x1xf32>
    %108 = arith.mulf %107, %106 : vector<32x32x1xf32>
    %109 = arith.addf %104, %108 : vector<32x32x1xf32>
    %c0_41 = arith.constant 0 : index
    %c9 = arith.constant 9 : index
    %110 = memref.load %arg3[%c0_41, %c9] : memref<2x49xf32, #tpu.memory_space<smem>>
    %111 = vector.extract_strided_slice %14 {offsets = [1, 2, 0], sizes = [32, 32, 1], strides = [1, 1, 1]} : vector<38x38x1xf32> to vector<32x32x1xf32>
    %112 = vector.broadcast %110 : f32 to vector<32x32x1xf32>
    %113 = arith.mulf %112, %111 : vector<32x32x1xf32>
    %114 = arith.addf %109, %113 : vector<32x32x1xf32>
    %c1_42 = arith.constant 1 : index
    %c9_43 = arith.constant 9 : index
    %115 = memref.load %arg3[%c1_42, %c9_43] : memref<2x49xf32, #tpu.memory_space<smem>>
    %116 = vector.extract_strided_slice %18 {offsets = [1, 2, 0], sizes = [32, 32, 1], strides = [1, 1, 1]} : vector<38x38x1xf32> to vector<32x32x1xf32>
    %117 = vector.broadcast %115 : f32 to vector<32x32x1xf32>
    %118 = arith.mulf %117, %116 : vector<32x32x1xf32>
    %119 = arith.addf %114, %118 : vector<32x32x1xf32>
    %c0_44 = arith.constant 0 : index
    %c10 = arith.constant 10 : index
    %120 = memref.load %arg3[%c0_44, %c10] : memref<2x49xf32, #tpu.memory_space<smem>>
    %121 = vector.extract_strided_slice %14 {offsets = [1, 3, 0], sizes = [32, 32, 1], strides = [1, 1, 1]} : vector<38x38x1xf32> to vector<32x32x1xf32>
    %122 = vector.broadcast %120 : f32 to vector<32x32x1xf32>
    %123 = arith.mulf %122, %121 : vector<32x32x1xf32>
    %124 = arith.addf %119, %123 : vector<32x32x1xf32>
    %c1_45 = arith.constant 1 : index
    %c10_46 = arith.constant 10 : index
    %125 = memref.load %arg3[%c1_45, %c10_46] : memref<2x49xf32, #tpu.memory_space<smem>>
    %126 = vector.extract_strided_slice %18 {offsets = [1, 3, 0], sizes = [32, 32, 1], strides = [1, 1, 1]} : vector<38x38x1xf32> to vector<32x32x1xf32>
    %127 = vector.broadcast %125 : f32 to vector<32x32x1xf32>
    %128 = arith.mulf %127, %126 : vector<32x32x1xf32>
    %129 = arith.addf %124, %128 : vector<32x32x1xf32>
    %c0_47 = arith.constant 0 : index
    %c11 = arith.constant 11 : index
    %130 = memref.load %arg3[%c0_47, %c11] : memref<2x49xf32, #tpu.memory_space<smem>>
    %131 = vector.extract_strided_slice %14 {offsets = [1, 4, 0], sizes = [32, 32, 1], strides = [1, 1, 1]} : vector<38x38x1xf32> to vector<32x32x1xf32>
    %132 = vector.broadcast %130 : f32 to vector<32x32x1xf32>
    %133 = arith.mulf %132, %131 : vector<32x32x1xf32>
    %134 = arith.addf %129, %133 : vector<32x32x1xf32>
    %c1_48 = arith.constant 1 : index
    %c11_49 = arith.constant 11 : index
    %135 = memref.load %arg3[%c1_48, %c11_49] : memref<2x49xf32, #tpu.memory_space<smem>>
    %136 = vector.extract_strided_slice %18 {offsets = [1, 4, 0], sizes = [32, 32, 1], strides = [1, 1, 1]} : vector<38x38x1xf32> to vector<32x32x1xf32>
    %137 = vector.broadcast %135 : f32 to vector<32x32x1xf32>
    %138 = arith.mulf %137, %136 : vector<32x32x1xf32>
    %139 = arith.addf %134, %138 : vector<32x32x1xf32>
    %c0_50 = arith.constant 0 : index
    %c12 = arith.constant 12 : index
    %140 = memref.load %arg3[%c0_50, %c12] : memref<2x49xf32, #tpu.memory_space<smem>>
    %141 = vector.extract_strided_slice %14 {offsets = [1, 5, 0], sizes = [32, 32, 1], strides = [1, 1, 1]} : vector<38x38x1xf32> to vector<32x32x1xf32>
    %142 = vector.broadcast %140 : f32 to vector<32x32x1xf32>
    %143 = arith.mulf %142, %141 : vector<32x32x1xf32>
    %144 = arith.addf %139, %143 : vector<32x32x1xf32>
    %c1_51 = arith.constant 1 : index
    %c12_52 = arith.constant 12 : index
    %145 = memref.load %arg3[%c1_51, %c12_52] : memref<2x49xf32, #tpu.memory_space<smem>>
    %146 = vector.extract_strided_slice %18 {offsets = [1, 5, 0], sizes = [32, 32, 1], strides = [1, 1, 1]} : vector<38x38x1xf32> to vector<32x32x1xf32>
    %147 = vector.broadcast %145 : f32 to vector<32x32x1xf32>
    %148 = arith.mulf %147, %146 : vector<32x32x1xf32>
    %149 = arith.addf %144, %148 : vector<32x32x1xf32>
    %c0_53 = arith.constant 0 : index
    %c13 = arith.constant 13 : index
    %150 = memref.load %arg3[%c0_53, %c13] : memref<2x49xf32, #tpu.memory_space<smem>>
    %151 = vector.extract_strided_slice %14 {offsets = [1, 6, 0], sizes = [32, 32, 1], strides = [1, 1, 1]} : vector<38x38x1xf32> to vector<32x32x1xf32>
    %152 = vector.broadcast %150 : f32 to vector<32x32x1xf32>
    %153 = arith.mulf %152, %151 : vector<32x32x1xf32>
    %154 = arith.addf %149, %153 : vector<32x32x1xf32>
    %c1_54 = arith.constant 1 : index
    %c13_55 = arith.constant 13 : index
    %155 = memref.load %arg3[%c1_54, %c13_55] : memref<2x49xf32, #tpu.memory_space<smem>>
    %156 = vector.extract_strided_slice %18 {offsets = [1, 6, 0], sizes = [32, 32, 1], strides = [1, 1, 1]} : vector<38x38x1xf32> to vector<32x32x1xf32>
    %157 = vector.broadcast %155 : f32 to vector<32x32x1xf32>
    %158 = arith.mulf %157, %156 : vector<32x32x1xf32>
    %159 = arith.addf %154, %158 : vector<32x32x1xf32>
    %c0_56 = arith.constant 0 : index
    %c14 = arith.constant 14 : index
    %160 = memref.load %arg3[%c0_56, %c14] : memref<2x49xf32, #tpu.memory_space<smem>>
    %161 = vector.extract_strided_slice %14 {offsets = [2, 0, 0], sizes = [32, 32, 1], strides = [1, 1, 1]} : vector<38x38x1xf32> to vector<32x32x1xf32>
    %162 = vector.broadcast %160 : f32 to vector<32x32x1xf32>
    %163 = arith.mulf %162, %161 : vector<32x32x1xf32>
    %164 = arith.addf %159, %163 : vector<32x32x1xf32>
    %c1_57 = arith.constant 1 : index
    %c14_58 = arith.constant 14 : index
    %165 = memref.load %arg3[%c1_57, %c14_58] : memref<2x49xf32, #tpu.memory_space<smem>>
    %166 = vector.extract_strided_slice %18 {offsets = [2, 0, 0], sizes = [32, 32, 1], strides = [1, 1, 1]} : vector<38x38x1xf32> to vector<32x32x1xf32>
    %167 = vector.broadcast %165 : f32 to vector<32x32x1xf32>
    %168 = arith.mulf %167, %166 : vector<32x32x1xf32>
    %169 = arith.addf %164, %168 : vector<32x32x1xf32>
    %c0_59 = arith.constant 0 : index
    %c15 = arith.constant 15 : index
    %170 = memref.load %arg3[%c0_59, %c15] : memref<2x49xf32, #tpu.memory_space<smem>>
    %171 = vector.extract_strided_slice %14 {offsets = [2, 1, 0], sizes = [32, 32, 1], strides = [1, 1, 1]} : vector<38x38x1xf32> to vector<32x32x1xf32>
    %172 = vector.broadcast %170 : f32 to vector<32x32x1xf32>
    %173 = arith.mulf %172, %171 : vector<32x32x1xf32>
    %174 = arith.addf %169, %173 : vector<32x32x1xf32>
    %c1_60 = arith.constant 1 : index
    %c15_61 = arith.constant 15 : index
    %175 = memref.load %arg3[%c1_60, %c15_61] : memref<2x49xf32, #tpu.memory_space<smem>>
    %176 = vector.extract_strided_slice %18 {offsets = [2, 1, 0], sizes = [32, 32, 1], strides = [1, 1, 1]} : vector<38x38x1xf32> to vector<32x32x1xf32>
    %177 = vector.broadcast %175 : f32 to vector<32x32x1xf32>
    %178 = arith.mulf %177, %176 : vector<32x32x1xf32>
    %179 = arith.addf %174, %178 : vector<32x32x1xf32>
    %c0_62 = arith.constant 0 : index
    %c16 = arith.constant 16 : index
    %180 = memref.load %arg3[%c0_62, %c16] : memref<2x49xf32, #tpu.memory_space<smem>>
    %181 = vector.extract_strided_slice %14 {offsets = [2, 2, 0], sizes = [32, 32, 1], strides = [1, 1, 1]} : vector<38x38x1xf32> to vector<32x32x1xf32>
    %182 = vector.broadcast %180 : f32 to vector<32x32x1xf32>
    %183 = arith.mulf %182, %181 : vector<32x32x1xf32>
    %184 = arith.addf %179, %183 : vector<32x32x1xf32>
    %c1_63 = arith.constant 1 : index
    %c16_64 = arith.constant 16 : index
    %185 = memref.load %arg3[%c1_63, %c16_64] : memref<2x49xf32, #tpu.memory_space<smem>>
    %186 = vector.extract_strided_slice %18 {offsets = [2, 2, 0], sizes = [32, 32, 1], strides = [1, 1, 1]} : vector<38x38x1xf32> to vector<32x32x1xf32>
    %187 = vector.broadcast %185 : f32 to vector<32x32x1xf32>
    %188 = arith.mulf %187, %186 : vector<32x32x1xf32>
    %189 = arith.addf %184, %188 : vector<32x32x1xf32>
    %c0_65 = arith.constant 0 : index
    %c17 = arith.constant 17 : index
    %190 = memref.load %arg3[%c0_65, %c17] : memref<2x49xf32, #tpu.memory_space<smem>>
    %191 = vector.extract_strided_slice %14 {offsets = [2, 3, 0], sizes = [32, 32, 1], strides = [1, 1, 1]} : vector<38x38x1xf32> to vector<32x32x1xf32>
    %192 = vector.broadcast %190 : f32 to vector<32x32x1xf32>
    %193 = arith.mulf %192, %191 : vector<32x32x1xf32>
    %194 = arith.addf %189, %193 : vector<32x32x1xf32>
    %c1_66 = arith.constant 1 : index
    %c17_67 = arith.constant 17 : index
    %195 = memref.load %arg3[%c1_66, %c17_67] : memref<2x49xf32, #tpu.memory_space<smem>>
    %196 = vector.extract_strided_slice %18 {offsets = [2, 3, 0], sizes = [32, 32, 1], strides = [1, 1, 1]} : vector<38x38x1xf32> to vector<32x32x1xf32>
    %197 = vector.broadcast %195 : f32 to vector<32x32x1xf32>
    %198 = arith.mulf %197, %196 : vector<32x32x1xf32>
    %199 = arith.addf %194, %198 : vector<32x32x1xf32>
    %c0_68 = arith.constant 0 : index
    %c18 = arith.constant 18 : index
    %200 = memref.load %arg3[%c0_68, %c18] : memref<2x49xf32, #tpu.memory_space<smem>>
    %201 = vector.extract_strided_slice %14 {offsets = [2, 4, 0], sizes = [32, 32, 1], strides = [1, 1, 1]} : vector<38x38x1xf32> to vector<32x32x1xf32>
    %202 = vector.broadcast %200 : f32 to vector<32x32x1xf32>
    %203 = arith.mulf %202, %201 : vector<32x32x1xf32>
    %204 = arith.addf %199, %203 : vector<32x32x1xf32>
    %c1_69 = arith.constant 1 : index
    %c18_70 = arith.constant 18 : index
    %205 = memref.load %arg3[%c1_69, %c18_70] : memref<2x49xf32, #tpu.memory_space<smem>>
    %206 = vector.extract_strided_slice %18 {offsets = [2, 4, 0], sizes = [32, 32, 1], strides = [1, 1, 1]} : vector<38x38x1xf32> to vector<32x32x1xf32>
    %207 = vector.broadcast %205 : f32 to vector<32x32x1xf32>
    %208 = arith.mulf %207, %206 : vector<32x32x1xf32>
    %209 = arith.addf %204, %208 : vector<32x32x1xf32>
    %c0_71 = arith.constant 0 : index
    %c19 = arith.constant 19 : index
    %210 = memref.load %arg3[%c0_71, %c19] : memref<2x49xf32, #tpu.memory_space<smem>>
    %211 = vector.extract_strided_slice %14 {offsets = [2, 5, 0], sizes = [32, 32, 1], strides = [1, 1, 1]} : vector<38x38x1xf32> to vector<32x32x1xf32>
    %212 = vector.broadcast %210 : f32 to vector<32x32x1xf32>
    %213 = arith.mulf %212, %211 : vector<32x32x1xf32>
    %214 = arith.addf %209, %213 : vector<32x32x1xf32>
    %c1_72 = arith.constant 1 : index
    %c19_73 = arith.constant 19 : index
    %215 = memref.load %arg3[%c1_72, %c19_73] : memref<2x49xf32, #tpu.memory_space<smem>>
    %216 = vector.extract_strided_slice %18 {offsets = [2, 5, 0], sizes = [32, 32, 1], strides = [1, 1, 1]} : vector<38x38x1xf32> to vector<32x32x1xf32>
    %217 = vector.broadcast %215 : f32 to vector<32x32x1xf32>
    %218 = arith.mulf %217, %216 : vector<32x32x1xf32>
    %219 = arith.addf %214, %218 : vector<32x32x1xf32>
    %c0_74 = arith.constant 0 : index
    %c20 = arith.constant 20 : index
    %220 = memref.load %arg3[%c0_74, %c20] : memref<2x49xf32, #tpu.memory_space<smem>>
    %221 = vector.extract_strided_slice %14 {offsets = [2, 6, 0], sizes = [32, 32, 1], strides = [1, 1, 1]} : vector<38x38x1xf32> to vector<32x32x1xf32>
    %222 = vector.broadcast %220 : f32 to vector<32x32x1xf32>
    %223 = arith.mulf %222, %221 : vector<32x32x1xf32>
    %224 = arith.addf %219, %223 : vector<32x32x1xf32>
    %c1_75 = arith.constant 1 : index
    %c20_76 = arith.constant 20 : index
    %225 = memref.load %arg3[%c1_75, %c20_76] : memref<2x49xf32, #tpu.memory_space<smem>>
    %226 = vector.extract_strided_slice %18 {offsets = [2, 6, 0], sizes = [32, 32, 1], strides = [1, 1, 1]} : vector<38x38x1xf32> to vector<32x32x1xf32>
    %227 = vector.broadcast %225 : f32 to vector<32x32x1xf32>
    %228 = arith.mulf %227, %226 : vector<32x32x1xf32>
    %229 = arith.addf %224, %228 : vector<32x32x1xf32>
    %c0_77 = arith.constant 0 : index
    %c21 = arith.constant 21 : index
    %230 = memref.load %arg3[%c0_77, %c21] : memref<2x49xf32, #tpu.memory_space<smem>>
    %231 = vector.extract_strided_slice %14 {offsets = [3, 0, 0], sizes = [32, 32, 1], strides = [1, 1, 1]} : vector<38x38x1xf32> to vector<32x32x1xf32>
    %232 = vector.broadcast %230 : f32 to vector<32x32x1xf32>
    %233 = arith.mulf %232, %231 : vector<32x32x1xf32>
    %234 = arith.addf %229, %233 : vector<32x32x1xf32>
    %c1_78 = arith.constant 1 : index
    %c21_79 = arith.constant 21 : index
    %235 = memref.load %arg3[%c1_78, %c21_79] : memref<2x49xf32, #tpu.memory_space<smem>>
    %236 = vector.extract_strided_slice %18 {offsets = [3, 0, 0], sizes = [32, 32, 1], strides = [1, 1, 1]} : vector<38x38x1xf32> to vector<32x32x1xf32>
    %237 = vector.broadcast %235 : f32 to vector<32x32x1xf32>
    %238 = arith.mulf %237, %236 : vector<32x32x1xf32>
    %239 = arith.addf %234, %238 : vector<32x32x1xf32>
    %c0_80 = arith.constant 0 : index
    %c22 = arith.constant 22 : index
    %240 = memref.load %arg3[%c0_80, %c22] : memref<2x49xf32, #tpu.memory_space<smem>>
    %241 = vector.extract_strided_slice %14 {offsets = [3, 1, 0], sizes = [32, 32, 1], strides = [1, 1, 1]} : vector<38x38x1xf32> to vector<32x32x1xf32>
    %242 = vector.broadcast %240 : f32 to vector<32x32x1xf32>
    %243 = arith.mulf %242, %241 : vector<32x32x1xf32>
    %244 = arith.addf %239, %243 : vector<32x32x1xf32>
    %c1_81 = arith.constant 1 : index
    %c22_82 = arith.constant 22 : index
    %245 = memref.load %arg3[%c1_81, %c22_82] : memref<2x49xf32, #tpu.memory_space<smem>>
    %246 = vector.extract_strided_slice %18 {offsets = [3, 1, 0], sizes = [32, 32, 1], strides = [1, 1, 1]} : vector<38x38x1xf32> to vector<32x32x1xf32>
    %247 = vector.broadcast %245 : f32 to vector<32x32x1xf32>
    %248 = arith.mulf %247, %246 : vector<32x32x1xf32>
    %249 = arith.addf %244, %248 : vector<32x32x1xf32>
    %c0_83 = arith.constant 0 : index
    %c23 = arith.constant 23 : index
    %250 = memref.load %arg3[%c0_83, %c23] : memref<2x49xf32, #tpu.memory_space<smem>>
    %251 = vector.extract_strided_slice %14 {offsets = [3, 2, 0], sizes = [32, 32, 1], strides = [1, 1, 1]} : vector<38x38x1xf32> to vector<32x32x1xf32>
    %252 = vector.broadcast %250 : f32 to vector<32x32x1xf32>
    %253 = arith.mulf %252, %251 : vector<32x32x1xf32>
    %254 = arith.addf %249, %253 : vector<32x32x1xf32>
    %c1_84 = arith.constant 1 : index
    %c23_85 = arith.constant 23 : index
    %255 = memref.load %arg3[%c1_84, %c23_85] : memref<2x49xf32, #tpu.memory_space<smem>>
    %256 = vector.extract_strided_slice %18 {offsets = [3, 2, 0], sizes = [32, 32, 1], strides = [1, 1, 1]} : vector<38x38x1xf32> to vector<32x32x1xf32>
    %257 = vector.broadcast %255 : f32 to vector<32x32x1xf32>
    %258 = arith.mulf %257, %256 : vector<32x32x1xf32>
    %259 = arith.addf %254, %258 : vector<32x32x1xf32>
    %c0_86 = arith.constant 0 : index
    %c24 = arith.constant 24 : index
    %260 = memref.load %arg3[%c0_86, %c24] : memref<2x49xf32, #tpu.memory_space<smem>>
    %261 = vector.extract_strided_slice %14 {offsets = [3, 3, 0], sizes = [32, 32, 1], strides = [1, 1, 1]} : vector<38x38x1xf32> to vector<32x32x1xf32>
    %262 = vector.broadcast %260 : f32 to vector<32x32x1xf32>
    %263 = arith.mulf %262, %261 : vector<32x32x1xf32>
    %264 = arith.addf %259, %263 : vector<32x32x1xf32>
    %c1_87 = arith.constant 1 : index
    %c24_88 = arith.constant 24 : index
    %265 = memref.load %arg3[%c1_87, %c24_88] : memref<2x49xf32, #tpu.memory_space<smem>>
    %266 = vector.extract_strided_slice %18 {offsets = [3, 3, 0], sizes = [32, 32, 1], strides = [1, 1, 1]} : vector<38x38x1xf32> to vector<32x32x1xf32>
    %267 = vector.broadcast %265 : f32 to vector<32x32x1xf32>
    %268 = arith.mulf %267, %266 : vector<32x32x1xf32>
    %269 = arith.addf %264, %268 : vector<32x32x1xf32>
    %c0_89 = arith.constant 0 : index
    %c25 = arith.constant 25 : index
    %270 = memref.load %arg3[%c0_89, %c25] : memref<2x49xf32, #tpu.memory_space<smem>>
    %271 = vector.extract_strided_slice %14 {offsets = [3, 4, 0], sizes = [32, 32, 1], strides = [1, 1, 1]} : vector<38x38x1xf32> to vector<32x32x1xf32>
    %272 = vector.broadcast %270 : f32 to vector<32x32x1xf32>
    %273 = arith.mulf %272, %271 : vector<32x32x1xf32>
    %274 = arith.addf %269, %273 : vector<32x32x1xf32>
    %c1_90 = arith.constant 1 : index
    %c25_91 = arith.constant 25 : index
    %275 = memref.load %arg3[%c1_90, %c25_91] : memref<2x49xf32, #tpu.memory_space<smem>>
    %276 = vector.extract_strided_slice %18 {offsets = [3, 4, 0], sizes = [32, 32, 1], strides = [1, 1, 1]} : vector<38x38x1xf32> to vector<32x32x1xf32>
    %277 = vector.broadcast %275 : f32 to vector<32x32x1xf32>
    %278 = arith.mulf %277, %276 : vector<32x32x1xf32>
    %279 = arith.addf %274, %278 : vector<32x32x1xf32>
    %c0_92 = arith.constant 0 : index
    %c26 = arith.constant 26 : index
    %280 = memref.load %arg3[%c0_92, %c26] : memref<2x49xf32, #tpu.memory_space<smem>>
    %281 = vector.extract_strided_slice %14 {offsets = [3, 5, 0], sizes = [32, 32, 1], strides = [1, 1, 1]} : vector<38x38x1xf32> to vector<32x32x1xf32>
    %282 = vector.broadcast %280 : f32 to vector<32x32x1xf32>
    %283 = arith.mulf %282, %281 : vector<32x32x1xf32>
    %284 = arith.addf %279, %283 : vector<32x32x1xf32>
    %c1_93 = arith.constant 1 : index
    %c26_94 = arith.constant 26 : index
    %285 = memref.load %arg3[%c1_93, %c26_94] : memref<2x49xf32, #tpu.memory_space<smem>>
    %286 = vector.extract_strided_slice %18 {offsets = [3, 5, 0], sizes = [32, 32, 1], strides = [1, 1, 1]} : vector<38x38x1xf32> to vector<32x32x1xf32>
    %287 = vector.broadcast %285 : f32 to vector<32x32x1xf32>
    %288 = arith.mulf %287, %286 : vector<32x32x1xf32>
    %289 = arith.addf %284, %288 : vector<32x32x1xf32>
    %c0_95 = arith.constant 0 : index
    %c27 = arith.constant 27 : index
    %290 = memref.load %arg3[%c0_95, %c27] : memref<2x49xf32, #tpu.memory_space<smem>>
    %291 = vector.extract_strided_slice %14 {offsets = [3, 6, 0], sizes = [32, 32, 1], strides = [1, 1, 1]} : vector<38x38x1xf32> to vector<32x32x1xf32>
    %292 = vector.broadcast %290 : f32 to vector<32x32x1xf32>
    %293 = arith.mulf %292, %291 : vector<32x32x1xf32>
    %294 = arith.addf %289, %293 : vector<32x32x1xf32>
    %c1_96 = arith.constant 1 : index
    %c27_97 = arith.constant 27 : index
    %295 = memref.load %arg3[%c1_96, %c27_97] : memref<2x49xf32, #tpu.memory_space<smem>>
    %296 = vector.extract_strided_slice %18 {offsets = [3, 6, 0], sizes = [32, 32, 1], strides = [1, 1, 1]} : vector<38x38x1xf32> to vector<32x32x1xf32>
    %297 = vector.broadcast %295 : f32 to vector<32x32x1xf32>
    %298 = arith.mulf %297, %296 : vector<32x32x1xf32>
    %299 = arith.addf %294, %298 : vector<32x32x1xf32>
    %c0_98 = arith.constant 0 : index
    %c28 = arith.constant 28 : index
    %300 = memref.load %arg3[%c0_98, %c28] : memref<2x49xf32, #tpu.memory_space<smem>>
    %301 = vector.extract_strided_slice %14 {offsets = [4, 0, 0], sizes = [32, 32, 1], strides = [1, 1, 1]} : vector<38x38x1xf32> to vector<32x32x1xf32>
    %302 = vector.broadcast %300 : f32 to vector<32x32x1xf32>
    %303 = arith.mulf %302, %301 : vector<32x32x1xf32>
    %304 = arith.addf %299, %303 : vector<32x32x1xf32>
    %c1_99 = arith.constant 1 : index
    %c28_100 = arith.constant 28 : index
    %305 = memref.load %arg3[%c1_99, %c28_100] : memref<2x49xf32, #tpu.memory_space<smem>>
    %306 = vector.extract_strided_slice %18 {offsets = [4, 0, 0], sizes = [32, 32, 1], strides = [1, 1, 1]} : vector<38x38x1xf32> to vector<32x32x1xf32>
    %307 = vector.broadcast %305 : f32 to vector<32x32x1xf32>
    %308 = arith.mulf %307, %306 : vector<32x32x1xf32>
    %309 = arith.addf %304, %308 : vector<32x32x1xf32>
    %c0_101 = arith.constant 0 : index
    %c29 = arith.constant 29 : index
    %310 = memref.load %arg3[%c0_101, %c29] : memref<2x49xf32, #tpu.memory_space<smem>>
    %311 = vector.extract_strided_slice %14 {offsets = [4, 1, 0], sizes = [32, 32, 1], strides = [1, 1, 1]} : vector<38x38x1xf32> to vector<32x32x1xf32>
    %312 = vector.broadcast %310 : f32 to vector<32x32x1xf32>
    %313 = arith.mulf %312, %311 : vector<32x32x1xf32>
    %314 = arith.addf %309, %313 : vector<32x32x1xf32>
    %c1_102 = arith.constant 1 : index
    %c29_103 = arith.constant 29 : index
    %315 = memref.load %arg3[%c1_102, %c29_103] : memref<2x49xf32, #tpu.memory_space<smem>>
    %316 = vector.extract_strided_slice %18 {offsets = [4, 1, 0], sizes = [32, 32, 1], strides = [1, 1, 1]} : vector<38x38x1xf32> to vector<32x32x1xf32>
    %317 = vector.broadcast %315 : f32 to vector<32x32x1xf32>
    %318 = arith.mulf %317, %316 : vector<32x32x1xf32>
    %319 = arith.addf %314, %318 : vector<32x32x1xf32>
    %c0_104 = arith.constant 0 : index
    %c30 = arith.constant 30 : index
    %320 = memref.load %arg3[%c0_104, %c30] : memref<2x49xf32, #tpu.memory_space<smem>>
    %321 = vector.extract_strided_slice %14 {offsets = [4, 2, 0], sizes = [32, 32, 1], strides = [1, 1, 1]} : vector<38x38x1xf32> to vector<32x32x1xf32>
    %322 = vector.broadcast %320 : f32 to vector<32x32x1xf32>
    %323 = arith.mulf %322, %321 : vector<32x32x1xf32>
    %324 = arith.addf %319, %323 : vector<32x32x1xf32>
    %c1_105 = arith.constant 1 : index
    %c30_106 = arith.constant 30 : index
    %325 = memref.load %arg3[%c1_105, %c30_106] : memref<2x49xf32, #tpu.memory_space<smem>>
    %326 = vector.extract_strided_slice %18 {offsets = [4, 2, 0], sizes = [32, 32, 1], strides = [1, 1, 1]} : vector<38x38x1xf32> to vector<32x32x1xf32>
    %327 = vector.broadcast %325 : f32 to vector<32x32x1xf32>
    %328 = arith.mulf %327, %326 : vector<32x32x1xf32>
    %329 = arith.addf %324, %328 : vector<32x32x1xf32>
    %c0_107 = arith.constant 0 : index
    %c31 = arith.constant 31 : index
    %330 = memref.load %arg3[%c0_107, %c31] : memref<2x49xf32, #tpu.memory_space<smem>>
    %331 = vector.extract_strided_slice %14 {offsets = [4, 3, 0], sizes = [32, 32, 1], strides = [1, 1, 1]} : vector<38x38x1xf32> to vector<32x32x1xf32>
    %332 = vector.broadcast %330 : f32 to vector<32x32x1xf32>
    %333 = arith.mulf %332, %331 : vector<32x32x1xf32>
    %334 = arith.addf %329, %333 : vector<32x32x1xf32>
    %c1_108 = arith.constant 1 : index
    %c31_109 = arith.constant 31 : index
    %335 = memref.load %arg3[%c1_108, %c31_109] : memref<2x49xf32, #tpu.memory_space<smem>>
    %336 = vector.extract_strided_slice %18 {offsets = [4, 3, 0], sizes = [32, 32, 1], strides = [1, 1, 1]} : vector<38x38x1xf32> to vector<32x32x1xf32>
    %337 = vector.broadcast %335 : f32 to vector<32x32x1xf32>
    %338 = arith.mulf %337, %336 : vector<32x32x1xf32>
    %339 = arith.addf %334, %338 : vector<32x32x1xf32>
    %c0_110 = arith.constant 0 : index
    %c32 = arith.constant 32 : index
    %340 = memref.load %arg3[%c0_110, %c32] : memref<2x49xf32, #tpu.memory_space<smem>>
    %341 = vector.extract_strided_slice %14 {offsets = [4, 4, 0], sizes = [32, 32, 1], strides = [1, 1, 1]} : vector<38x38x1xf32> to vector<32x32x1xf32>
    %342 = vector.broadcast %340 : f32 to vector<32x32x1xf32>
    %343 = arith.mulf %342, %341 : vector<32x32x1xf32>
    %344 = arith.addf %339, %343 : vector<32x32x1xf32>
    %c1_111 = arith.constant 1 : index
    %c32_112 = arith.constant 32 : index
    %345 = memref.load %arg3[%c1_111, %c32_112] : memref<2x49xf32, #tpu.memory_space<smem>>
    %346 = vector.extract_strided_slice %18 {offsets = [4, 4, 0], sizes = [32, 32, 1], strides = [1, 1, 1]} : vector<38x38x1xf32> to vector<32x32x1xf32>
    %347 = vector.broadcast %345 : f32 to vector<32x32x1xf32>
    %348 = arith.mulf %347, %346 : vector<32x32x1xf32>
    %349 = arith.addf %344, %348 : vector<32x32x1xf32>
    %c0_113 = arith.constant 0 : index
    %c33 = arith.constant 33 : index
    %350 = memref.load %arg3[%c0_113, %c33] : memref<2x49xf32, #tpu.memory_space<smem>>
    %351 = vector.extract_strided_slice %14 {offsets = [4, 5, 0], sizes = [32, 32, 1], strides = [1, 1, 1]} : vector<38x38x1xf32> to vector<32x32x1xf32>
    %352 = vector.broadcast %350 : f32 to vector<32x32x1xf32>
    %353 = arith.mulf %352, %351 : vector<32x32x1xf32>
    %354 = arith.addf %349, %353 : vector<32x32x1xf32>
    %c1_114 = arith.constant 1 : index
    %c33_115 = arith.constant 33 : index
    %355 = memref.load %arg3[%c1_114, %c33_115] : memref<2x49xf32, #tpu.memory_space<smem>>
    %356 = vector.extract_strided_slice %18 {offsets = [4, 5, 0], sizes = [32, 32, 1], strides = [1, 1, 1]} : vector<38x38x1xf32> to vector<32x32x1xf32>
    %357 = vector.broadcast %355 : f32 to vector<32x32x1xf32>
    %358 = arith.mulf %357, %356 : vector<32x32x1xf32>
    %359 = arith.addf %354, %358 : vector<32x32x1xf32>
    %c0_116 = arith.constant 0 : index
    %c34 = arith.constant 34 : index
    %360 = memref.load %arg3[%c0_116, %c34] : memref<2x49xf32, #tpu.memory_space<smem>>
    %361 = vector.extract_strided_slice %14 {offsets = [4, 6, 0], sizes = [32, 32, 1], strides = [1, 1, 1]} : vector<38x38x1xf32> to vector<32x32x1xf32>
    %362 = vector.broadcast %360 : f32 to vector<32x32x1xf32>
    %363 = arith.mulf %362, %361 : vector<32x32x1xf32>
    %364 = arith.addf %359, %363 : vector<32x32x1xf32>
    %c1_117 = arith.constant 1 : index
    %c34_118 = arith.constant 34 : index
    %365 = memref.load %arg3[%c1_117, %c34_118] : memref<2x49xf32, #tpu.memory_space<smem>>
    %366 = vector.extract_strided_slice %18 {offsets = [4, 6, 0], sizes = [32, 32, 1], strides = [1, 1, 1]} : vector<38x38x1xf32> to vector<32x32x1xf32>
    %367 = vector.broadcast %365 : f32 to vector<32x32x1xf32>
    %368 = arith.mulf %367, %366 : vector<32x32x1xf32>
    %369 = arith.addf %364, %368 : vector<32x32x1xf32>
    %c0_119 = arith.constant 0 : index
    %c35 = arith.constant 35 : index
    %370 = memref.load %arg3[%c0_119, %c35] : memref<2x49xf32, #tpu.memory_space<smem>>
    %371 = vector.extract_strided_slice %14 {offsets = [5, 0, 0], sizes = [32, 32, 1], strides = [1, 1, 1]} : vector<38x38x1xf32> to vector<32x32x1xf32>
    %372 = vector.broadcast %370 : f32 to vector<32x32x1xf32>
    %373 = arith.mulf %372, %371 : vector<32x32x1xf32>
    %374 = arith.addf %369, %373 : vector<32x32x1xf32>
    %c1_120 = arith.constant 1 : index
    %c35_121 = arith.constant 35 : index
    %375 = memref.load %arg3[%c1_120, %c35_121] : memref<2x49xf32, #tpu.memory_space<smem>>
    %376 = vector.extract_strided_slice %18 {offsets = [5, 0, 0], sizes = [32, 32, 1], strides = [1, 1, 1]} : vector<38x38x1xf32> to vector<32x32x1xf32>
    %377 = vector.broadcast %375 : f32 to vector<32x32x1xf32>
    %378 = arith.mulf %377, %376 : vector<32x32x1xf32>
    %379 = arith.addf %374, %378 : vector<32x32x1xf32>
    %c0_122 = arith.constant 0 : index
    %c36 = arith.constant 36 : index
    %380 = memref.load %arg3[%c0_122, %c36] : memref<2x49xf32, #tpu.memory_space<smem>>
    %381 = vector.extract_strided_slice %14 {offsets = [5, 1, 0], sizes = [32, 32, 1], strides = [1, 1, 1]} : vector<38x38x1xf32> to vector<32x32x1xf32>
    %382 = vector.broadcast %380 : f32 to vector<32x32x1xf32>
    %383 = arith.mulf %382, %381 : vector<32x32x1xf32>
    %384 = arith.addf %379, %383 : vector<32x32x1xf32>
    %c1_123 = arith.constant 1 : index
    %c36_124 = arith.constant 36 : index
    %385 = memref.load %arg3[%c1_123, %c36_124] : memref<2x49xf32, #tpu.memory_space<smem>>
    %386 = vector.extract_strided_slice %18 {offsets = [5, 1, 0], sizes = [32, 32, 1], strides = [1, 1, 1]} : vector<38x38x1xf32> to vector<32x32x1xf32>
    %387 = vector.broadcast %385 : f32 to vector<32x32x1xf32>
    %388 = arith.mulf %387, %386 : vector<32x32x1xf32>
    %389 = arith.addf %384, %388 : vector<32x32x1xf32>
    %c0_125 = arith.constant 0 : index
    %c37 = arith.constant 37 : index
    %390 = memref.load %arg3[%c0_125, %c37] : memref<2x49xf32, #tpu.memory_space<smem>>
    %391 = vector.extract_strided_slice %14 {offsets = [5, 2, 0], sizes = [32, 32, 1], strides = [1, 1, 1]} : vector<38x38x1xf32> to vector<32x32x1xf32>
    %392 = vector.broadcast %390 : f32 to vector<32x32x1xf32>
    %393 = arith.mulf %392, %391 : vector<32x32x1xf32>
    %394 = arith.addf %389, %393 : vector<32x32x1xf32>
    %c1_126 = arith.constant 1 : index
    %c37_127 = arith.constant 37 : index
    %395 = memref.load %arg3[%c1_126, %c37_127] : memref<2x49xf32, #tpu.memory_space<smem>>
    %396 = vector.extract_strided_slice %18 {offsets = [5, 2, 0], sizes = [32, 32, 1], strides = [1, 1, 1]} : vector<38x38x1xf32> to vector<32x32x1xf32>
    %397 = vector.broadcast %395 : f32 to vector<32x32x1xf32>
    %398 = arith.mulf %397, %396 : vector<32x32x1xf32>
    %399 = arith.addf %394, %398 : vector<32x32x1xf32>
    %c0_128 = arith.constant 0 : index
    %c38 = arith.constant 38 : index
    %400 = memref.load %arg3[%c0_128, %c38] : memref<2x49xf32, #tpu.memory_space<smem>>
    %401 = vector.extract_strided_slice %14 {offsets = [5, 3, 0], sizes = [32, 32, 1], strides = [1, 1, 1]} : vector<38x38x1xf32> to vector<32x32x1xf32>
    %402 = vector.broadcast %400 : f32 to vector<32x32x1xf32>
    %403 = arith.mulf %402, %401 : vector<32x32x1xf32>
    %404 = arith.addf %399, %403 : vector<32x32x1xf32>
    %c1_129 = arith.constant 1 : index
    %c38_130 = arith.constant 38 : index
    %405 = memref.load %arg3[%c1_129, %c38_130] : memref<2x49xf32, #tpu.memory_space<smem>>
    %406 = vector.extract_strided_slice %18 {offsets = [5, 3, 0], sizes = [32, 32, 1], strides = [1, 1, 1]} : vector<38x38x1xf32> to vector<32x32x1xf32>
    %407 = vector.broadcast %405 : f32 to vector<32x32x1xf32>
    %408 = arith.mulf %407, %406 : vector<32x32x1xf32>
    %409 = arith.addf %404, %408 : vector<32x32x1xf32>
    %c0_131 = arith.constant 0 : index
    %c39 = arith.constant 39 : index
    %410 = memref.load %arg3[%c0_131, %c39] : memref<2x49xf32, #tpu.memory_space<smem>>
    %411 = vector.extract_strided_slice %14 {offsets = [5, 4, 0], sizes = [32, 32, 1], strides = [1, 1, 1]} : vector<38x38x1xf32> to vector<32x32x1xf32>
    %412 = vector.broadcast %410 : f32 to vector<32x32x1xf32>
    %413 = arith.mulf %412, %411 : vector<32x32x1xf32>
    %414 = arith.addf %409, %413 : vector<32x32x1xf32>
    %c1_132 = arith.constant 1 : index
    %c39_133 = arith.constant 39 : index
    %415 = memref.load %arg3[%c1_132, %c39_133] : memref<2x49xf32, #tpu.memory_space<smem>>
    %416 = vector.extract_strided_slice %18 {offsets = [5, 4, 0], sizes = [32, 32, 1], strides = [1, 1, 1]} : vector<38x38x1xf32> to vector<32x32x1xf32>
    %417 = vector.broadcast %415 : f32 to vector<32x32x1xf32>
    %418 = arith.mulf %417, %416 : vector<32x32x1xf32>
    %419 = arith.addf %414, %418 : vector<32x32x1xf32>
    %c0_134 = arith.constant 0 : index
    %c40 = arith.constant 40 : index
    %420 = memref.load %arg3[%c0_134, %c40] : memref<2x49xf32, #tpu.memory_space<smem>>
    %421 = vector.extract_strided_slice %14 {offsets = [5, 5, 0], sizes = [32, 32, 1], strides = [1, 1, 1]} : vector<38x38x1xf32> to vector<32x32x1xf32>
    %422 = vector.broadcast %420 : f32 to vector<32x32x1xf32>
    %423 = arith.mulf %422, %421 : vector<32x32x1xf32>
    %424 = arith.addf %419, %423 : vector<32x32x1xf32>
    %c1_135 = arith.constant 1 : index
    %c40_136 = arith.constant 40 : index
    %425 = memref.load %arg3[%c1_135, %c40_136] : memref<2x49xf32, #tpu.memory_space<smem>>
    %426 = vector.extract_strided_slice %18 {offsets = [5, 5, 0], sizes = [32, 32, 1], strides = [1, 1, 1]} : vector<38x38x1xf32> to vector<32x32x1xf32>
    %427 = vector.broadcast %425 : f32 to vector<32x32x1xf32>
    %428 = arith.mulf %427, %426 : vector<32x32x1xf32>
    %429 = arith.addf %424, %428 : vector<32x32x1xf32>
    %c0_137 = arith.constant 0 : index
    %c41 = arith.constant 41 : index
    %430 = memref.load %arg3[%c0_137, %c41] : memref<2x49xf32, #tpu.memory_space<smem>>
    %431 = vector.extract_strided_slice %14 {offsets = [5, 6, 0], sizes = [32, 32, 1], strides = [1, 1, 1]} : vector<38x38x1xf32> to vector<32x32x1xf32>
    %432 = vector.broadcast %430 : f32 to vector<32x32x1xf32>
    %433 = arith.mulf %432, %431 : vector<32x32x1xf32>
    %434 = arith.addf %429, %433 : vector<32x32x1xf32>
    %c1_138 = arith.constant 1 : index
    %c41_139 = arith.constant 41 : index
    %435 = memref.load %arg3[%c1_138, %c41_139] : memref<2x49xf32, #tpu.memory_space<smem>>
    %436 = vector.extract_strided_slice %18 {offsets = [5, 6, 0], sizes = [32, 32, 1], strides = [1, 1, 1]} : vector<38x38x1xf32> to vector<32x32x1xf32>
    %437 = vector.broadcast %435 : f32 to vector<32x32x1xf32>
    %438 = arith.mulf %437, %436 : vector<32x32x1xf32>
    %439 = arith.addf %434, %438 : vector<32x32x1xf32>
    %c0_140 = arith.constant 0 : index
    %c42 = arith.constant 42 : index
    %440 = memref.load %arg3[%c0_140, %c42] : memref<2x49xf32, #tpu.memory_space<smem>>
    %441 = vector.extract_strided_slice %14 {offsets = [6, 0, 0], sizes = [32, 32, 1], strides = [1, 1, 1]} : vector<38x38x1xf32> to vector<32x32x1xf32>
    %442 = vector.broadcast %440 : f32 to vector<32x32x1xf32>
    %443 = arith.mulf %442, %441 : vector<32x32x1xf32>
    %444 = arith.addf %439, %443 : vector<32x32x1xf32>
    %c1_141 = arith.constant 1 : index
    %c42_142 = arith.constant 42 : index
    %445 = memref.load %arg3[%c1_141, %c42_142] : memref<2x49xf32, #tpu.memory_space<smem>>
    %446 = vector.extract_strided_slice %18 {offsets = [6, 0, 0], sizes = [32, 32, 1], strides = [1, 1, 1]} : vector<38x38x1xf32> to vector<32x32x1xf32>
    %447 = vector.broadcast %445 : f32 to vector<32x32x1xf32>
    %448 = arith.mulf %447, %446 : vector<32x32x1xf32>
    %449 = arith.addf %444, %448 : vector<32x32x1xf32>
    %c0_143 = arith.constant 0 : index
    %c43 = arith.constant 43 : index
    %450 = memref.load %arg3[%c0_143, %c43] : memref<2x49xf32, #tpu.memory_space<smem>>
    %451 = vector.extract_strided_slice %14 {offsets = [6, 1, 0], sizes = [32, 32, 1], strides = [1, 1, 1]} : vector<38x38x1xf32> to vector<32x32x1xf32>
    %452 = vector.broadcast %450 : f32 to vector<32x32x1xf32>
    %453 = arith.mulf %452, %451 : vector<32x32x1xf32>
    %454 = arith.addf %449, %453 : vector<32x32x1xf32>
    %c1_144 = arith.constant 1 : index
    %c43_145 = arith.constant 43 : index
    %455 = memref.load %arg3[%c1_144, %c43_145] : memref<2x49xf32, #tpu.memory_space<smem>>
    %456 = vector.extract_strided_slice %18 {offsets = [6, 1, 0], sizes = [32, 32, 1], strides = [1, 1, 1]} : vector<38x38x1xf32> to vector<32x32x1xf32>
    %457 = vector.broadcast %455 : f32 to vector<32x32x1xf32>
    %458 = arith.mulf %457, %456 : vector<32x32x1xf32>
    %459 = arith.addf %454, %458 : vector<32x32x1xf32>
    %c0_146 = arith.constant 0 : index
    %c44 = arith.constant 44 : index
    %460 = memref.load %arg3[%c0_146, %c44] : memref<2x49xf32, #tpu.memory_space<smem>>
    %461 = vector.extract_strided_slice %14 {offsets = [6, 2, 0], sizes = [32, 32, 1], strides = [1, 1, 1]} : vector<38x38x1xf32> to vector<32x32x1xf32>
    %462 = vector.broadcast %460 : f32 to vector<32x32x1xf32>
    %463 = arith.mulf %462, %461 : vector<32x32x1xf32>
    %464 = arith.addf %459, %463 : vector<32x32x1xf32>
    %c1_147 = arith.constant 1 : index
    %c44_148 = arith.constant 44 : index
    %465 = memref.load %arg3[%c1_147, %c44_148] : memref<2x49xf32, #tpu.memory_space<smem>>
    %466 = vector.extract_strided_slice %18 {offsets = [6, 2, 0], sizes = [32, 32, 1], strides = [1, 1, 1]} : vector<38x38x1xf32> to vector<32x32x1xf32>
    %467 = vector.broadcast %465 : f32 to vector<32x32x1xf32>
    %468 = arith.mulf %467, %466 : vector<32x32x1xf32>
    %469 = arith.addf %464, %468 : vector<32x32x1xf32>
    %c0_149 = arith.constant 0 : index
    %c45 = arith.constant 45 : index
    %470 = memref.load %arg3[%c0_149, %c45] : memref<2x49xf32, #tpu.memory_space<smem>>
    %471 = vector.extract_strided_slice %14 {offsets = [6, 3, 0], sizes = [32, 32, 1], strides = [1, 1, 1]} : vector<38x38x1xf32> to vector<32x32x1xf32>
    %472 = vector.broadcast %470 : f32 to vector<32x32x1xf32>
    %473 = arith.mulf %472, %471 : vector<32x32x1xf32>
    %474 = arith.addf %469, %473 : vector<32x32x1xf32>
    %c1_150 = arith.constant 1 : index
    %c45_151 = arith.constant 45 : index
    %475 = memref.load %arg3[%c1_150, %c45_151] : memref<2x49xf32, #tpu.memory_space<smem>>
    %476 = vector.extract_strided_slice %18 {offsets = [6, 3, 0], sizes = [32, 32, 1], strides = [1, 1, 1]} : vector<38x38x1xf32> to vector<32x32x1xf32>
    %477 = vector.broadcast %475 : f32 to vector<32x32x1xf32>
    %478 = arith.mulf %477, %476 : vector<32x32x1xf32>
    %479 = arith.addf %474, %478 : vector<32x32x1xf32>
    %c0_152 = arith.constant 0 : index
    %c46 = arith.constant 46 : index
    %480 = memref.load %arg3[%c0_152, %c46] : memref<2x49xf32, #tpu.memory_space<smem>>
    %481 = vector.extract_strided_slice %14 {offsets = [6, 4, 0], sizes = [32, 32, 1], strides = [1, 1, 1]} : vector<38x38x1xf32> to vector<32x32x1xf32>
    %482 = vector.broadcast %480 : f32 to vector<32x32x1xf32>
    %483 = arith.mulf %482, %481 : vector<32x32x1xf32>
    %484 = arith.addf %479, %483 : vector<32x32x1xf32>
    %c1_153 = arith.constant 1 : index
    %c46_154 = arith.constant 46 : index
    %485 = memref.load %arg3[%c1_153, %c46_154] : memref<2x49xf32, #tpu.memory_space<smem>>
    %486 = vector.extract_strided_slice %18 {offsets = [6, 4, 0], sizes = [32, 32, 1], strides = [1, 1, 1]} : vector<38x38x1xf32> to vector<32x32x1xf32>
    %487 = vector.broadcast %485 : f32 to vector<32x32x1xf32>
    %488 = arith.mulf %487, %486 : vector<32x32x1xf32>
    %489 = arith.addf %484, %488 : vector<32x32x1xf32>
    %c0_155 = arith.constant 0 : index
    %c47 = arith.constant 47 : index
    %490 = memref.load %arg3[%c0_155, %c47] : memref<2x49xf32, #tpu.memory_space<smem>>
    %491 = vector.extract_strided_slice %14 {offsets = [6, 5, 0], sizes = [32, 32, 1], strides = [1, 1, 1]} : vector<38x38x1xf32> to vector<32x32x1xf32>
    %492 = vector.broadcast %490 : f32 to vector<32x32x1xf32>
    %493 = arith.mulf %492, %491 : vector<32x32x1xf32>
    %494 = arith.addf %489, %493 : vector<32x32x1xf32>
    %c1_156 = arith.constant 1 : index
    %c47_157 = arith.constant 47 : index
    %495 = memref.load %arg3[%c1_156, %c47_157] : memref<2x49xf32, #tpu.memory_space<smem>>
    %496 = vector.extract_strided_slice %18 {offsets = [6, 5, 0], sizes = [32, 32, 1], strides = [1, 1, 1]} : vector<38x38x1xf32> to vector<32x32x1xf32>
    %497 = vector.broadcast %495 : f32 to vector<32x32x1xf32>
    %498 = arith.mulf %497, %496 : vector<32x32x1xf32>
    %499 = arith.addf %494, %498 : vector<32x32x1xf32>
    %c0_158 = arith.constant 0 : index
    %c48 = arith.constant 48 : index
    %500 = memref.load %arg3[%c0_158, %c48] : memref<2x49xf32, #tpu.memory_space<smem>>
    %501 = vector.extract_strided_slice %14 {offsets = [6, 6, 0], sizes = [32, 32, 1], strides = [1, 1, 1]} : vector<38x38x1xf32> to vector<32x32x1xf32>
    %502 = vector.broadcast %500 : f32 to vector<32x32x1xf32>
    %503 = arith.mulf %502, %501 : vector<32x32x1xf32>
    %504 = arith.addf %499, %503 : vector<32x32x1xf32>
    %c1_159 = arith.constant 1 : index
    %c48_160 = arith.constant 48 : index
    %505 = memref.load %arg3[%c1_159, %c48_160] : memref<2x49xf32, #tpu.memory_space<smem>>
    %506 = vector.extract_strided_slice %18 {offsets = [6, 6, 0], sizes = [32, 32, 1], strides = [1, 1, 1]} : vector<38x38x1xf32> to vector<32x32x1xf32>
    %507 = vector.broadcast %505 : f32 to vector<32x32x1xf32>
    %508 = arith.mulf %507, %506 : vector<32x32x1xf32>
    %509 = arith.addf %504, %508 : vector<32x32x1xf32>
    %510 = arith.negf %509 : vector<32x32x1xf32>
    %511 = math.exp %510 : vector<32x32x1xf32>
    %cst_161 = arith.constant 1.000000e+00 : f32
    %512 = vector.broadcast %cst_161 : f32 to vector<32x32x1xf32>
    %513 = arith.addf %512, %511 : vector<32x32x1xf32>
    %514 = arith.divf %512, %513 : vector<32x32x1xf32>
    %515 = vector.broadcast %514 : vector<32x32x1xf32> to vector<32x32x32xf32>
    %516 = arith.mulf %4, %515 : vector<32x32x32xf32>
    %517 = vector.shape_cast %516 : vector<32x32x32xf32> to vector<1x32x32x32xf32>
    %c0_162 = arith.constant 0 : index
    %c0_163 = arith.constant 0 : index
    %c0_164 = arith.constant 0 : index
    %c0_165 = arith.constant 0 : index
    %518 = vector.load %arg4[%c0_162, %c0_163, %c0_164, %c0_165] : memref<1x32x32x32xf32, #tpu.memory_space<vmem>>, vector<1x32x32x32xf32>
    tpu.vector_store %arg4[%c0_162, %c0_163, %c0_164, %c0_165], %517 {strides = array<i32>} : memref<1x32x32x32xf32, #tpu.memory_space<vmem>>, vector<1x32x32x32xf32>,
    return
  }
  func.func @transform_0(%arg0: i32) -> (i32, i32, i32, i32) {
    %c0_i32 = arith.constant 0 : i32
    %c0_i32_0 = arith.constant 0 : i32
    %c0_i32_1 = arith.constant 0 : i32
    %c0_i32_2 = arith.constant 0 : i32
    return %arg0, %c0_i32, %c0_i32_0, %c0_i32_1 : i32, i32, i32, i32
  }
  func.func @transform_1(%arg0: i32) -> (i32, i32, i32) {
    %c0_i32 = arith.constant 0 : i32
    %c0_i32_0 = arith.constant 0 : i32
    %c0_i32_1 = arith.constant 0 : i32
    return %arg0, %c0_i32, %c0_i32_0 : i32, i32, i32
  }
  func.func @transform_2(%arg0: i32) -> (i32, i32) {
    %c0_i32 = arith.constant 0 : i32
    %c0_i32_0 = arith.constant 0 : i32
    %c0_i32_1 = arith.constant 0 : i32
    return %c0_i32, %c0_i32_0 : i32, i32
  }
  func.func @transform_3(%arg0: i32) -> (i32, i32, i32, i32) {
    %c0_i32 = arith.constant 0 : i32
    %c0_i32_0 = arith.constant 0 : i32
    %c0_i32_1 = arith.constant 0 : i32
    %c0_i32_2 = arith.constant 0 : i32
    return %arg0, %c0_i32, %c0_i32_0, %c0_i32_1 : i32, i32, i32, i32
  }
}

</mosaic_0001>

<llo_original>
// kernel: tile.23
$region0: #{tile.23}
  #allocation0 [shape = 's32[1]{0}', space=sflag, size = 0x4, scoped, tag = 'scoped memory for tile.23']
  %s0 = inlined_call_operand.vmem [shape: f32[32], index: 0, kind: input, shape index: {}]
  %s1 = inlined_call_operand.vmem [shape: f32[8,32], index: 1, kind: output, shape index: {}]
  // Predicated region
  $region2: #{tile.23} parent=0 // pred_check
    _
  $region3: #{tile.23} parent=0 // pred_check_branch
    %3 = sbr.rel (0) target = $region5
  $region4: #{tile.23} parent=0 // pred_region
    _
  $region5: #{tile.23} parent=0 // pred_fallthru
    _
  %v4 = vld [vmem:[%s0] ss:$0 sm:$0xff]
  %5 = vst [vmem:[%s1] sm:$0xff] %v4

// kernel: tile.24
$region0: #{tile.24}
  %s0 = inlined_call_operand.vmem [shape: f32[8,32], index: 0, kind: input, shape index: {}]
  %s1 = inlined_call_operand.vmem [shape: f32[1,256], index: 1, kind: output, shape index: {}]
  $region1: #{tile.24} parent=0
    #allocation0 [shape = 'u8[8192]{0}', space=vmem, size = 0x2000, scoped, tag = 'scoped mem for output reshape']
    %s2 = smov 3
    %v3 = vld [vmem:[%s0] ss:$4 sm:%s2]
    %vm4 = vcmask 261120
    %5 = vst.msk [vmem:[#allocation0] ss:$8 sm:$0x3] %vm4, %v3
    %s6 = scalar_lea.vmem %s0, 3
    %s7 = smov 3
    %v8 = vld [vmem:[%s6] ss:$4 sm:%s7]
    %9 = vrot.lane.b32.xlu0 %v8, 96
    %v10 = vpop.permute.xlu0 %9
    %vm11 = vcmask 1048320
    %12 = vst.msk [vmem:[#allocation0] ss:$8 sm:$0x3] %vm11, %v10
    %s13 = scalar_lea.vmem %s0, 2
    %s14 = smov 3
    %v15 = vld [vmem:[%s13] ss:$4 sm:%s14]
    %16 = vrot.lane.b32.xlu0 %v15, 64
    %v17 = vpop.permute.xlu0 %16
    %vm18 = vcmask 785920
    %19 = vst.msk [vmem:[#allocation0] ss:$8 sm:$0x3] %vm18, %v17
    %s20 = scalar_lea.vmem %s0, 1
    %s21 = smov 3
    %v22 = vld [vmem:[%s20] ss:$4 sm:%s21]
    %23 = vrot.lane.b32.xlu0 %v22, 32
    %v24 = vpop.permute.xlu0 %23
    %vm25 = vcmask 523520
    %26 = vst.msk [vmem:[#allocation0] ss:$8 sm:$0x3] %vm25, %v24
    %s28 = sshllo.u32 0, 1
    %v30 = vld [vmem:[#allocation0] sm:%s28]
    %s31 = sshllo.u32 0, 1
    %32 = vst [vmem:[%s1] sm:%s31] %v30
    %s33 = scalar_lea.vmem [#allocation0], 8
    %v34 = vld [vmem:[%s33] sm:%s28]
    %s35 = sshllo.u32 0, 1
    %s36 = scalar_lea.vmem %s1, 1
    %37 = vst [vmem:[%s36] sm:%s35] %v34

// kernel: tile.33
$region0: #{tile.33}
  #allocation0 [shape = 's32[1]{0}', space=sflag, size = 0x4, scoped, tag = 'scoped memory for tile.33']
  %s0 = inlined_call_operand.vmem [shape: f32[32], index: 0, kind: input, shape index: {}]
  %s1 = inlined_call_operand.vmem [shape: f32[16,32], index: 1, kind: output, shape index: {}]
  // Predicated region
  $region2: #{tile.33} parent=0 // pred_check
    _
  $region3: #{tile.33} parent=0 // pred_check_branch
    %3 = sbr.rel (0) target = $region5
  $region4: #{tile.33} parent=0 // pred_region
    _
  $region5: #{tile.33} parent=0 // pred_fallthru
    _
  %v4 = vld [vmem:[%s0] ss:$0 sm:$0xff]
  %5 = vst [vmem:[%s1] sm:$0xff] %v4
  %s6 = scalar_lea.vmem %s1, 8
  %7 = vst [vmem:[%s6] sm:$0xff] %v4

// kernel: tile.34
$region0: #{tile.34}
  %s0 = inlined_call_operand.vmem [shape: f32[16,32], index: 0, kind: input, shape index: {}]
  %s1 = inlined_call_operand.vmem [shape: f32[1,512], index: 1, kind: output, shape index: {}]
  $region1: #{tile.34} parent=0
    #allocation0 [shape = 'u8[16384]{0}', space=vmem, size = 0x4000, scoped, tag = 'scoped mem for output reshape']
    %v2 = vld [vmem:[%s0] ss:$4 sm:$0xf]
    %vm3 = vcmask 261120
    %4 = vst.msk [vmem:[#allocation0] ss:$8 sm:$0xf] %vm3, %v2
    %s5 = scalar_lea.vmem %s0, 3
    %v6 = vld [vmem:[%s5] ss:$4 sm:$0xf]
    %7 = vrot.lane.b32.xlu0 %v6, 96
    %v8 = vpop.permute.xlu0 %7
    %vm9 = vcmask 1048320
    %10 = vst.msk [vmem:[#allocation0] ss:$8 sm:$0xf] %vm9, %v8
    %s11 = scalar_lea.vmem %s0, 2
    %v12 = vld [vmem:[%s11] ss:$4 sm:$0xf]
    %13 = vrot.lane.b32.xlu0 %v12, 64
    %v14 = vpop.permute.xlu0 %13
    %vm15 = vcmask 785920
    %16 = vst.msk [vmem:[#allocation0] ss:$8 sm:$0xf] %vm15, %v14
    %s17 = scalar_lea.vmem %s0, 1
    %v18 = vld [vmem:[%s17] ss:$4 sm:$0xf]
    %19 = vrot.lane.b32.xlu0 %v18, 32
    %v20 = vpop.permute.xlu0 %19
    %vm21 = vcmask 523520
    %22 = vst.msk [vmem:[#allocation0] ss:$8 sm:$0xf] %vm21, %v20
    %s24 = sshllo.u32 0, 1
    %v26 = vld [vmem:[#allocation0] sm:%s24]
    %s27 = sshllo.u32 0, 1
    %28 = vst [vmem:[%s1] sm:%s27] %v26
    %s29 = scalar_lea.vmem [#allocation0], 8
    %v30 = vld [vmem:[%s29] sm:%s24]
    %s31 = sshllo.u32 0, 1
    %s32 = scalar_lea.vmem %s1, 1
    %33 = vst [vmem:[%s32] sm:%s31] %v30
    %s34 = scalar_lea.vmem [#allocation0], 16
    %v35 = vld [vmem:[%s34] sm:%s24]
    %s36 = sshllo.u32 0, 1
    %s37 = smul.addr 1, 2
    %s38 = scalar_lea.vmem %s1, %s37
    %39 = vst [vmem:[%s38] sm:%s36] %v35
    %s40 = scalar_lea.vmem [#allocation0], 24
    %v41 = vld [vmem:[%s40] sm:%s24]
    %s42 = sshllo.u32 0, 1
    %s43 = smul.addr 1, 3
    %s44 = scalar_lea.vmem %s1, %s43
    %45 = vst [vmem:[%s44] sm:%s42] %v41

</llo_original>
